<compile_context>
chip_gen: v7x
topology: tpu7x:2x2x1
jax: 0.10.0
libtpu: 0.0.40
codegen_flags: <defaults>
</compile_context>

<pallas_src>
import functools

import jax
import jax.numpy as jnp
import numpy as np
from jax.experimental import pallas as pl
from jax.experimental.pallas import tpu as pltpu


# ---------------------------------------------------------------------------
# Fused Pallas kernel
# ---------------------------------------------------------------------------

def pret_attention_kernel(x_ref, kp_ref, vp_ref, wqkv_ref, wproj_ref,
                          bproj_ref, o_ref, *, num_heads, scale):
    """Fused QKV projection + prefix attention + output projection.

    One grid step handles one batch element, all heads resident in VMEM:
      x_ref:     (1, N, C)               native dtype
      kp_ref:    (1, H, L_p, hd)         key prefix, head-leading layout
      vp_ref:    (1, H, L_p, hd)         value prefix, head-leading layout
      wqkv_ref:  (C, 3C)                 (in, out) layout -> canonical MXU feed
      wproj_ref: (C, C)                  (in, out) layout
      bproj_ref: (1, C)
      o_ref:     (1, N, C)               lane-dense output, head slabs along C
    """
    _, N, C = x_ref.shape
    H = num_heads
    hd = C // H

    x = x_ref[0]                                             # (N, C), native dtype

    # --- QKV projection: bf16/native MXU operands, f32 accumulation --------
    qkv = jnp.dot(x, wqkv_ref[...],
                  preferred_element_type=jnp.float32).astype(x.dtype)   # (N, 3C)

    # --- One-shot head split (no per-head lane-strided slices) -------------
    def split_heads(mat):                                    # (N, C) -> (H, N, hd)
        return jnp.transpose(mat.reshape(N, H, hd), (1, 0, 2))

    q = split_heads(qkv[:, :C] * scale)                      # scale on q (N*hd elems)
    k = split_heads(qkv[:, C:2 * C])
    v = split_heads(qkv[:, 2 * C:])

    kp = kp_ref[0]                                           # (H, L_p, hd), native dtype
    vp = vp_ref[0]                                           # (H, L_p, hd)

    # --- Prefix attention, batched over heads; no K/V concat ---------------
    # Softmax is fused across the (prefix, self) score blocks; mathematically
    # identical to softmax over the concatenated key sequence.
    s_p = jnp.einsum('hnd,hld->hnl', q, kp,
                     preferred_element_type=jnp.float32)     # (H, N, L_p) f32
    s_s = jnp.einsum('hnd,hmd->hnm', q, k,
                     preferred_element_type=jnp.float32)     # (H, N, N)  f32

    m = jnp.maximum(jnp.max(s_p, axis=-1, keepdims=True),
                    jnp.max(s_s, axis=-1, keepdims=True))    # (H, N, 1)
    p_p = jnp.exp(s_p - m)
    p_s = jnp.exp(s_s - m)
    denom = (jnp.sum(p_p, axis=-1, keepdims=True)
             + jnp.sum(p_s, axis=-1, keepdims=True))
    inv = pl.reciprocal(denom, approx=True)                  # EUP slot, ~free

    ctx = (jnp.einsum('hnl,hld->hnd', p_p.astype(vp.dtype), vp,
                      preferred_element_type=jnp.float32)
           + jnp.einsum('hnm,hmd->hnd', p_s.astype(v.dtype), v,
                        preferred_element_type=jnp.float32))  # (H, N, hd) f32
    ctx = ctx * inv

    # --- Merge heads with a single transpose+reshape (no lane concat) ------
    ctx = jnp.transpose(ctx, (1, 0, 2)).reshape(N, C)
    ctx = ctx.astype(wproj_ref.dtype)

    # --- Output projection: y = ctx @ W_proj^T + b --------------------------
    y = jnp.dot(ctx, wproj_ref[...], preferred_element_type=jnp.float32)
    y = y + bproj_ref[...].astype(jnp.float32)
    o_ref[0] = y.astype(o_ref.dtype)


# ---------------------------------------------------------------------------
# Wrapper
# ---------------------------------------------------------------------------

def pret_attention(x, prompt, w_qkv, w_proj, b_proj, *, num_heads):
    """Pallas implementation of PreT_Attention.forward (use_lae=False, drop=0)."""
    B, N, C = x.shape
    H = num_heads
    hd = C // H
    L_p = prompt.shape[2]
    S = L_p + N
    scale = hd ** (-0.5)

    # One-time HBM layout prep (plain XLA ops, amortized over the B grid steps):
    #   * weights to (in, out) so in-kernel dots are canonical MXU feeds,
    #   * prompt to head-leading (B, H, L_p, hd) key/value prefixes.
    w_qkv_t = jnp.transpose(w_qkv)                       # (C, 3C)
    w_proj_t = jnp.transpose(w_proj)                     # (C, C)
    prompt_h = jnp.transpose(prompt, (0, 1, 3, 2, 4))    # (B, 2, H, L_p, hd)
    kp_all = prompt_h[:, 0]                              # (B, H, L_p, hd)
    vp_all = prompt_h[:, 1]                              # (B, H, L_p, hd)
    b_proj_2d = b_proj.reshape(1, C)

    kernel = functools.partial(
        pret_attention_kernel, num_heads=num_heads, scale=scale)

    itemsize = jnp.dtype(x.dtype).itemsize
    flops = (2 * B * N * C * (3 * C)              # qkv projection
             + 4 * B * H * N * S * hd             # q@k^T and p@v
             + 2 * B * N * C * C)                 # output projection
    transcendentals = B * H * N * S               # exp in softmax
    bytes_accessed = itemsize * (2 * B * N * C            # x + out
                                 + B * 2 * L_p * C        # prompt
                                 + 4 * C * C + C)         # weights + bias

    # VMEM budget: resident weights (double-buffered by default) + per-step
    # activations (f32 score/ctx buffers dominate).  Clamp to 64 MiB (v7x).
    weight_bytes = itemsize * (4 * C * C + C)
    step_bytes = (itemsize * (2 * N * C + 3 * N * C + 2 * L_p * C)
                  + 4 * (2 * H * N * S + H * N * hd + N * C))
    vmem_limit = int(min(max(2 * weight_bytes + 4 * step_bytes + (4 << 20),
                             32 << 20),
                         64 << 20))

    return pl.pallas_call(
        kernel,
        out_shape=jax.ShapeDtypeStruct((B, N, C), x.dtype),
        grid=(B,),
        in_specs=[
            pl.BlockSpec((1, N, C), lambda b: (b, 0, 0)),
            pl.BlockSpec((1, H, L_p, hd), lambda b: (b, 0, 0, 0)),
            pl.BlockSpec((1, H, L_p, hd), lambda b: (b, 0, 0, 0)),
            # Weights/bias: constant block index -> stay resident across grid.
            pl.BlockSpec((C, 3 * C), lambda b: (0, 0)),
            pl.BlockSpec((C, C), lambda b: (0, 0)),
            pl.BlockSpec((1, C), lambda b: (0, 0)),
        ],
        out_specs=pl.BlockSpec((1, N, C), lambda b: (b, 0, 0)),
        compiler_params=pltpu.CompilerParams(
            dimension_semantics=("parallel",),
            vmem_limit_bytes=vmem_limit),
        cost_estimate=pl.CostEstimate(
            flops=flops,
            transcendentals=transcendentals,
            bytes_accessed=bytes_accessed),
    )(x, kp_all, vp_all, w_qkv_t, w_proj_t, b_proj_2d)


# ---------------------------------------------------------------------------
# Pure-JAX reference (mirrors the PyTorch forward exactly)
# ---------------------------------------------------------------------------

def pret_attention_ref(x, prompt, w_qkv, w_proj, b_proj, *, num_heads):
    B, N, C = x.shape
    hd = C // num_heads
    scale = hd ** (-0.5)
    qkv = (x @ w_qkv.T).reshape(B, N, 3, num_heads, hd).transpose(2, 0, 3, 1, 4)
    q, k, v = qkv[0], qkv[1], qkv[2]
    pp = jnp.transpose(prompt, (1, 0, 3, 2, 4))
    k = jnp.concatenate([pp[0], k], axis=2)
    v = jnp.concatenate([pp[1], v], axis=2)
    attn = jax.nn.softmax((q @ jnp.swapaxes(k, -2, -1)) * scale, axis=-1)
    out = jnp.swapaxes(attn @ v, 1, 2).reshape(B, N, C)
    return out @ w_proj.T + b_proj


# ---------------------------------------------------------------------------
# Main
# ---------------------------------------------------------------------------

if __name__ == "__main__":
    B, N, C = 2, 8, 32
    num_heads = 4
    hd = C // num_heads
    L_p = 4  # prompt prefix length

    key = jax.random.PRNGKey(0)
    kx, kp, kw1, kw2, kb = jax.random.split(key, 5)

    x = jax.random.normal(kx, (B, N, C), dtype=jnp.float32)
    prompt = jax.random.normal(kp, (B, 2, L_p, num_heads, hd), dtype=jnp.float32)

    # Deterministic parameter init (torch.nn.Linear shapes: (out, in)).
    w_qkv = jax.random.normal(kw1, (3 * C, C), dtype=jnp.float32) * 0.05
    w_proj = jax.random.normal(kw2, (C, C), dtype=jnp.float32) * 0.05
    b_proj = jax.random.normal(kb, (C,), dtype=jnp.float32) * 0.05

    fn = jax.jit(functools.partial(pret_attention, num_heads=num_heads))
    y = fn(x, prompt, w_qkv, w_proj, b_proj)
    jax.block_until_ready(y)

    y_ref = pret_attention_ref(x, prompt, w_qkv, w_proj, b_proj,
                               num_heads=num_heads)
    # Slightly relaxed tolerance: softmax denominator uses the EUP approximate
    # reciprocal (pl.reciprocal(approx=True)).
    np.testing.assert_allclose(np.asarray(y), np.asarray(y_ref),
                               rtol=2e-3, atol=2e-3)

    print("KERNEL_OK")
</pallas_src>

<mosaic_0001>
module attributes {stable_mosaic.version = 11 : i64} {
  func.func @pret_attention_kernel(%arg0: i32, %arg1: memref<1x8x32xf32, #tpu.memory_space<vmem>>, %arg2: memref<1x4x4x8xf32, #tpu.memory_space<vmem>>, %arg3: memref<1x4x4x8xf32, #tpu.memory_space<vmem>>, %arg4: memref<32x96xf32, #tpu.memory_space<vmem>>, %arg5: memref<32x32xf32, #tpu.memory_space<vmem>>, %arg6: memref<1x32xf32, #tpu.memory_space<vmem>>, %arg7: memref<1x8x32xf32, #tpu.memory_space<vmem>>) attributes {dimension_semantics = [#tpu.dimension_semantics<parallel>], iteration_bounds = array<i64: 2>, scalar_prefetch = 0 : i64, scratch_operands = 0 : i64, tpu.core_type = #tpu.core_type<tc>, window_params = [{transform_indices = @transform_0, window_bounds = array<i64: 1, 8, 32>}, {transform_indices = @transform_1, window_bounds = array<i64: 1, 4, 4, 8>}, {transform_indices = @transform_2, window_bounds = array<i64: 1, 4, 4, 8>}, {pipeline_mode = #tpu.pipeline_mode<synchronous>, transform_indices = @transform_3, window_bounds = array<i64: 32, 96>}, {pipeline_mode = #tpu.pipeline_mode<synchronous>, transform_indices = @transform_4, window_bounds = array<i64: 32, 32>}, {pipeline_mode = #tpu.pipeline_mode<synchronous>, transform_indices = @transform_5, window_bounds = array<i64: 1, 32>}, {transform_indices = @transform_6, window_bounds = array<i64: 1, 8, 32>}]} {
    %c0 = arith.constant 0 : index
    %c0_0 = arith.constant 0 : index
    %c0_1 = arith.constant 0 : index
    %0 = vector.load %arg1[%c0, %c0_0, %c0_1] : memref<1x8x32xf32, #tpu.memory_space<vmem>>, vector<1x8x32xf32>
    %1 = vector.shape_cast %0 : vector<1x8x32xf32> to vector<8x32xf32>
    %c0_2 = arith.constant 0 : index
    %c0_3 = arith.constant 0 : index
    %2 = vector.load %arg4[%c0_2, %c0_3] : memref<32x96xf32, #tpu.memory_space<vmem>>, vector<32x96xf32>
    %cst = arith.constant dense<0.000000e+00> : vector<8x96xf32>
    %3 = tpu.matmul %1, %2, %cst {dimension_numbers = #tpu.dot_dimension_numbers<[1], [0], [0], [1], [0, 0, 1, 1], [], []>} : vector<8x32xf32>, vector<32x96xf32>, vector<8x96xf32> -> vector<8x96xf32>
    %4 = vector.extract_strided_slice %3 {offsets = [0, 0], sizes = [8, 32], strides = [1, 1]} : vector<8x96xf32> to vector<8x32xf32>
    %cst_4 = arith.constant 0.353553385 : f32
    %5 = vector.broadcast %cst_4 : f32 to vector<8x32xf32>
    %6 = arith.mulf %4, %5 : vector<8x32xf32>
    %7 = vector.shape_cast %6 : vector<8x32xf32> to vector<8x4x8xf32>
    %8 = tpu.transpose %7, [1, 0, 2] : vector<8x4x8xf32> -> vector<4x8x8xf32>
    %9 = vector.extract_strided_slice %3 {offsets = [0, 32], sizes = [8, 32], strides = [1, 1]} : vector<8x96xf32> to vector<8x32xf32>
    %10 = vector.shape_cast %9 : vector<8x32xf32> to vector<8x4x8xf32>
    %11 = tpu.transpose %10, [1, 0, 2] : vector<8x4x8xf32> -> vector<4x8x8xf32>
    %12 = vector.extract_strided_slice %3 {offsets = [0, 64], sizes = [8, 32], strides = [1, 1]} : vector<8x96xf32> to vector<8x32xf32>
    %13 = vector.shape_cast %12 : vector<8x32xf32> to vector<8x4x8xf32>
    %14 = tpu.transpose %13, [1, 0, 2] : vector<8x4x8xf32> -> vector<4x8x8xf32>
    %c0_5 = arith.constant 0 : index
    %c0_6 = arith.constant 0 : index
    %c0_7 = arith.constant 0 : index
    %c0_8 = arith.constant 0 : index
    %15 = vector.load %arg2[%c0_5, %c0_6, %c0_7, %c0_8] : memref<1x4x4x8xf32, #tpu.memory_space<vmem>>, vector<1x4x4x8xf32>
    %16 = vector.shape_cast %15 : vector<1x4x4x8xf32> to vector<4x4x8xf32>
    %c0_9 = arith.constant 0 : index
    %c0_10 = arith.constant 0 : index
    %c0_11 = arith.constant 0 : index
    %c0_12 = arith.constant 0 : index
    %17 = vector.load %arg3[%c0_9, %c0_10, %c0_11, %c0_12] : memref<1x4x4x8xf32, #tpu.memory_space<vmem>>, vector<1x4x4x8xf32>
    %18 = vector.shape_cast %17 : vector<1x4x4x8xf32> to vector<4x4x8xf32>
    "tpu.trace_start"() <{level = 10 : i32, message = "hnd,hld->hnl"}> : () -> ()
    %cst_13 = arith.constant dense<0.000000e+00> : vector<4x8x4xf32>
    %19 = tpu.matmul %8, %16, %cst_13 {dimension_numbers = #tpu.dot_dimension_numbers<[2], [2], [1], [1], [0, 0, 0, 1, 1, 1], [0], [0]>} : vector<4x8x8xf32>, vector<4x4x8xf32>, vector<4x8x4xf32> -> vector<4x8x4xf32>
    "tpu.trace_stop"() : () -> ()
    "tpu.trace_start"() <{level = 10 : i32, message = "hnd,hmd->hnm"}> : () -> ()
    %cst_14 = arith.constant dense<0.000000e+00> : vector<4x8x8xf32>
    %20 = tpu.matmul %8, %11, %cst_14 {dimension_numbers = #tpu.dot_dimension_numbers<[2], [2], [1], [1], [0, 0, 0, 1, 1, 1], [0], [0]>} : vector<4x8x8xf32>, vector<4x8x8xf32>, vector<4x8x8xf32> -> vector<4x8x8xf32>
    "tpu.trace_stop"() : () -> ()
    %cst_15 = arith.constant dense<0xFF800000> : vector<4x8xf32>
    %21 = vector.multi_reduction <maximumf>, %19, %cst_15 [2] : vector<4x8x4xf32> to vector<4x8xf32>
    %22 = vector.shape_cast %21 : vector<4x8xf32> to vector<4x8x1xf32>
    %cst_16 = arith.constant dense<0xFF800000> : vector<4x8xf32>
    %23 = vector.multi_reduction <maximumf>, %20, %cst_16 [2] : vector<4x8x8xf32> to vector<4x8xf32>
    %24 = vector.shape_cast %23 : vector<4x8xf32> to vector<4x8x1xf32>
    %25 = arith.maximumf %22, %24 : vector<4x8x1xf32>
    %26 = vector.broadcast %25 : vector<4x8x1xf32> to vector<4x8x4xf32>
    %27 = arith.subf %19, %26 : vector<4x8x4xf32>
    %28 = math.exp %27 : vector<4x8x4xf32>
    %29 = vector.broadcast %25 : vector<4x8x1xf32> to vector<4x8x8xf32>
    %30 = arith.subf %20, %29 : vector<4x8x8xf32>
    %31 = math.exp %30 : vector<4x8x8xf32>
    %cst_17 = arith.constant dense<0.000000e+00> : vector<4x8xf32>
    %32 = vector.multi_reduction <add>, %28, %cst_17 [2] : vector<4x8x4xf32> to vector<4x8xf32>
    %33 = vector.shape_cast %32 : vector<4x8xf32> to vector<4x8x1xf32>
    %cst_18 = arith.constant dense<0.000000e+00> : vector<4x8xf32>
    %34 = vector.multi_reduction <add>, %31, %cst_18 [2] : vector<4x8x8xf32> to vector<4x8xf32>
    %35 = vector.shape_cast %34 : vector<4x8xf32> to vector<4x8x1xf32>
    %36 = arith.addf %33, %35 : vector<4x8x1xf32>
    %37 = tpu.reciprocal %36 {approx = true} : vector<4x8x1xf32> -> vector<4x8x1xf32>
    "tpu.trace_start"() <{level = 10 : i32, message = "hnl,hld->hnd"}> : () -> ()
    %cst_19 = arith.constant dense<0.000000e+00> : vector<4x8x8xf32>
    %38 = tpu.matmul %28, %18, %cst_19 {dimension_numbers = #tpu.dot_dimension_numbers<[2], [1], [1], [2], [0, 0, 0, 1, 1, 2], [0], [0]>} : vector<4x8x4xf32>, vector<4x4x8xf32>, vector<4x8x8xf32> -> vector<4x8x8xf32>
    "tpu.trace_stop"() : () -> ()
    "tpu.trace_start"() <{level = 10 : i32, message = "hnm,hmd->hnd"}> : () -> ()
    %cst_20 = arith.constant dense<0.000000e+00> : vector<4x8x8xf32>
    %39 = tpu.matmul %31, %14, %cst_20 {dimension_numbers = #tpu.dot_dimension_numbers<[2], [1], [1], [2], [0, 0, 0, 1, 1, 2], [0], [0]>} : vector<4x8x8xf32>, vector<4x8x8xf32>, vector<4x8x8xf32> -> vector<4x8x8xf32>
    "tpu.trace_stop"() : () -> ()
    %40 = arith.addf %38, %39 : vector<4x8x8xf32>
    %41 = vector.broadcast %37 : vector<4x8x1xf32> to vector<4x8x8xf32>
    %42 = arith.mulf %40, %41 : vector<4x8x8xf32>
    %43 = tpu.transpose %42, [1, 0, 2] : vector<4x8x8xf32> -> vector<8x4x8xf32>
    %44 = vector.shape_cast %43 : vector<8x4x8xf32> to vector<8x32xf32>
    %c0_21 = arith.constant 0 : index
    %c0_22 = arith.constant 0 : index
    %45 = vector.load %arg5[%c0_21, %c0_22] : memref<32x32xf32, #tpu.memory_space<vmem>>, vector<32x32xf32>
    %cst_23 = arith.constant dense<0.000000e+00> : vector<8x32xf32>
    %46 = tpu.matmul %44, %45, %cst_23 {dimension_numbers = #tpu.dot_dimension_numbers<[1], [0], [0], [1], [0, 0, 1, 1], [], []>} : vector<8x32xf32>, vector<32x32xf32>, vector<8x32xf32> -> vector<8x32xf32>
    %c0_24 = arith.constant 0 : index
    %c0_25 = arith.constant 0 : index
    %47 = vector.load %arg6[%c0_24, %c0_25] : memref<1x32xf32, #tpu.memory_space<vmem>>, vector<1x32xf32>
    %48 = vector.broadcast %47 : vector<1x32xf32> to vector<8x32xf32>
    %49 = arith.addf %46, %48 : vector<8x32xf32>
    %c0_26 = arith.constant 0 : index
    %c0_27 = arith.constant 0 : index
    %c0_28 = arith.constant 0 : index
    %50 = vector.load %arg7[%c0_26, %c0_27, %c0_28] : memref<1x8x32xf32, #tpu.memory_space<vmem>>, vector<1x8x32xf32>
    %51 = vector.shape_cast %50 : vector<1x8x32xf32> to vector<8x32xf32>
    %52 = vector.shape_cast %49 : vector<8x32xf32> to vector<1x8x32xf32>
    tpu.vector_store %arg7[%c0_26, %c0_27, %c0_28], %52 {strides = array<i32>} : memref<1x8x32xf32, #tpu.memory_space<vmem>>, vector<1x8x32xf32>,
    return
  }
  func.func @transform_0(%arg0: i32) -> (i32, i32, i32) {
    %c0_i32 = arith.constant 0 : i32
    %c0_i32_0 = arith.constant 0 : i32
    %c0_i32_1 = arith.constant 0 : i32
    return %arg0, %c0_i32, %c0_i32_0 : i32, i32, i32
  }
  func.func @transform_1(%arg0: i32) -> (i32, i32, i32, i32) {
    %c0_i32 = arith.constant 0 : i32
    %c0_i32_0 = arith.constant 0 : i32
    %c0_i32_1 = arith.constant 0 : i32
    %c0_i32_2 = arith.constant 0 : i32
    return %arg0, %c0_i32, %c0_i32_0, %c0_i32_1 : i32, i32, i32, i32
  }
  func.func @transform_2(%arg0: i32) -> (i32, i32, i32, i32) {
    %c0_i32 = arith.constant 0 : i32
    %c0_i32_0 = arith.constant 0 : i32
    %c0_i32_1 = arith.constant 0 : i32
    %c0_i32_2 = arith.constant 0 : i32
    return %arg0, %c0_i32, %c0_i32_0, %c0_i32_1 : i32, i32, i32, i32
  }
  func.func @transform_3(%arg0: i32) -> (i32, i32) {
    %c0_i32 = arith.constant 0 : i32
    %c0_i32_0 = arith.constant 0 : i32
    %c0_i32_1 = arith.constant 0 : i32
    return %c0_i32, %c0_i32_0 : i32, i32
  }
  func.func @transform_4(%arg0: i32) -> (i32, i32) {
    %c0_i32 = arith.constant 0 : i32
    %c0_i32_0 = arith.constant 0 : i32
    %c0_i32_1 = arith.constant 0 : i32
    return %c0_i32, %c0_i32_0 : i32, i32
  }
  func.func @transform_5(%arg0: i32) -> (i32, i32) {
    %c0_i32 = arith.constant 0 : i32
    %c0_i32_0 = arith.constant 0 : i32
    %c0_i32_1 = arith.constant 0 : i32
    return %c0_i32, %c0_i32_0 : i32, i32
  }
  func.func @transform_6(%arg0: i32) -> (i32, i32, i32) {
    %c0_i32 = arith.constant 0 : i32
    %c0_i32_0 = arith.constant 0 : i32
    %c0_i32_1 = arith.constant 0 : i32
    return %arg0, %c0_i32, %c0_i32_0 : i32, i32, i32
  }
}

</mosaic_0001>

<llo_original>
// kernel: pret_attention.1
$region0: #{pret_attention.1}
  #allocation0 [shape = 'u32[]', space=smem, size = 0x4, offset = 0x4, fixed_abs, tag = 'smem constant byte address 0x4 - core index']
  #allocation1 [shape = 'u32[144,128]{1,0:T(1,128)}', space=vmem, size = 0x12000, scoped, tag = 'internal scratch']
  %s0 = inlined_call_operand.vmem [shape: f32[2,8,32], index: 0, kind: input, shape index: {}]
  %s1 = inlined_call_operand.vmem [shape: f32[2,4,4,8], index: 1, kind: input, shape index: {}]
  %s2 = inlined_call_operand.vmem [shape: f32[2,4,4,8], index: 2, kind: input, shape index: {}]
  %s3 = inlined_call_operand.vmem [shape: f32[32,96], index: 3, kind: input, shape index: {}]
  %s4 = inlined_call_operand.vmem [shape: f32[32,32], index: 4, kind: input, shape index: {}]
  %s5 = inlined_call_operand.vmem [shape: f32[1,32], index: 5, kind: input, shape index: {}]
  %s6 = inlined_call_operand.hbm [shape: f32[2,8,32], index: 6, kind: output, shape index: {}]
  %s7 = sld [smem:[#allocation0]]
  $region57: #{pret_attention.1} parent=0
    _
  %s9 = ssub.s32 1, %s7
  %s10 = scalar_select 0, %s9, %s7
  $region1: #{pret_attention.1} parent=0
    #allocation2 [shape = 'u8[8192]{0}', space=vmem, size = 0x2000, scoped, tag = 'output window, operand 0']
    #allocation3 [shape = 's32[2]{0}', space=sflag, size = 0x8, scoped, tag = 'scoped memory for pret_attention.1']
    %11 = vsyncpa [#allocation3], 0
    %s12 = scalar_lea.sflag [#allocation3], 1
    %13 = vsyncpa %s12, 0
    loop: start=0, step=1, limit=4
    $region2: #{pret_attention.1} parent=1 // loop_pre_header
      _
    $region3: #{pret_attention.1} parent=1 // loop_header
      %s15 = sphi 0, %s19
      %p16 = scmp.ge.s32.totalorder %s15, 4
      %s25 = sphi 0, %s27
      %s28 = sphi 0, %s25
      %s29 = sphi 0, %s28
      %s45 = sphi 0, %s29
      %s51 = sphi 0, %s53
      %s54 = sphi 0, %s51
      %s55 = sphi 0, %s54
      %s71 = sphi 0, %s55
      %s77 = sphi 0, %s79
      %s80 = sphi 0, %s77
      %s81 = sphi 0, %s80
      %s97 = sphi 0, %s81
      %s101 = sphi 0, %s101
      %s103 = sphi 0, %s101
      %s104 = sphi 0, %s103
      %s118 = sphi 0, %s104
      %s122 = sphi 0, %s122
      %s124 = sphi 0, %s122
      %s125 = sphi 0, %s124
      %s139 = sphi 0, %s125
      %s143 = sphi 0, %s143
      %s145 = sphi 0, %s143
      %s146 = sphi 0, %s145
      %s160 = sphi 0, %s146
      %s166 = sphi 0, %s168
      %s169 = sphi 0, %s166
      %s170 = sphi 0, %s169
      %s186 = sphi 0, %s170
    $region4: #{pret_attention.1} parent=1 // loop_header_branch
      %18 = sbr.rel (%p16) target = $region8
    $region5: #{pret_attention.1} parent=1 // loop_body
      %s20 = ssub.s32 %s15, 1
      %s21 = ssub.s32 %s15, 2
      %s22 = sadd.s32 %s15, 1
      %s23 = ssub.s32 %s15, %s22
      %p24 = scmp.eq.s32.totalorder %s23, 0
      %s26 = sadd.s32 %s25, 1
      %s27 = scalar_select %p24, %s25, %s26
      %p30 = pneg %p24
      %p31 = scmp.eq.s32.totalorder %s15, 1
      %p32 = por %p30, %p31
      %p33 = scmp.ne.s32.totalorder %s25, %s28
      %p34 = scmp.eq.s32.totalorder %s15, 0
      %p35 = por %p33, %p34
      %p36 = scmp.ne.s32.totalorder %s25, %s28
      %p37 = scmp.eq.s32.totalorder %s20, 1
      %p38 = por %p36, %p37
      %p39 = scmp.ne.s32.totalorder %s28, %s29
      %p40 = scmp.eq.s32.totalorder %s20, 0
      %p41 = por %p39, %p40
      %p42 = scmp.ne.s32.totalorder %s28, %s29
      %p43 = scmp.eq.s32.totalorder %s21, 1
      %p44 = por %p42, %p43
      %p46 = scmp.ne.s32.totalorder %s29, %s45
      %p47 = scmp.eq.s32.totalorder %s21, 0
      %p48 = por %p46, %p47
      %s49 = ssub.s32 %s15, %s22
      %p50 = scmp.eq.s32.totalorder %s49, 0
      %s52 = sadd.s32 %s51, 1
      %s53 = scalar_select %p50, %s51, %s52
      %p56 = pneg %p50
      %p57 = scmp.eq.s32.totalorder %s15, 1
      %p58 = por %p56, %p57
      %p59 = scmp.ne.s32.totalorder %s51, %s54
      %p60 = scmp.eq.s32.totalorder %s15, 0
      %p61 = por %p59, %p60
      %p62 = scmp.ne.s32.totalorder %s51, %s54
      %p63 = scmp.eq.s32.totalorder %s20, 1
      %p64 = por %p62, %p63
      %p65 = scmp.ne.s32.totalorder %s54, %s55
      %p66 = scmp.eq.s32.totalorder %s20, 0
      %p67 = por %p65, %p66
      %p68 = scmp.ne.s32.totalorder %s54, %s55
      %p69 = scmp.eq.s32.totalorder %s21, 1
      %p70 = por %p68, %p69
      %p72 = scmp.ne.s32.totalorder %s55, %s71
      %p73 = scmp.eq.s32.totalorder %s21, 0
      %p74 = por %p72, %p73
      %s75 = ssub.s32 %s15, %s22
      %p76 = scmp.eq.s32.totalorder %s75, 0
      %s78 = sadd.s32 %s77, 1
      %s79 = scalar_select %p76, %s77, %s78
      %p82 = pneg %p76
      %p83 = scmp.eq.s32.totalorder %s15, 1
      %p84 = por %p82, %p83
      %p85 = scmp.ne.s32.totalorder %s77, %s80
      %p86 = scmp.eq.s32.totalorder %s15, 0
      %p87 = por %p85, %p86
      %p88 = scmp.ne.s32.totalorder %s77, %s80
      %p89 = scmp.eq.s32.totalorder %s20, 1
      %p90 = por %p88, %p89
      %p91 = scmp.ne.s32.totalorder %s80, %s81
      %p92 = scmp.eq.s32.totalorder %s20, 0
      %p93 = por %p91, %p92
      %p94 = scmp.ne.s32.totalorder %s80, %s81
      %p95 = scmp.eq.s32.totalorder %s21, 1
      %p96 = por %p94, %p95
      %p98 = scmp.ne.s32.totalorder %s81, %s97
      %p99 = scmp.eq.s32.totalorder %s21, 0
      %p100 = por %p98, %p99
      %s102 = sadd.s32 %s101, 1
      %p105 = scmp.eq.s32.totalorder %s15, 1
      %p106 = scmp.ne.s32.totalorder %s101, %s103
      %p107 = scmp.eq.s32.totalorder %s15, 0
      %p108 = por %p106, %p107
      %p109 = scmp.ne.s32.totalorder %s101, %s103
      %p110 = scmp.eq.s32.totalorder %s20, 1
      %p111 = por %p109, %p110
      %p112 = scmp.ne.s32.totalorder %s103, %s104
      %p113 = scmp.eq.s32.totalorder %s20, 0
      %p114 = por %p112, %p113
      %p115 = scmp.ne.s32.totalorder %s103, %s104
      %p116 = scmp.eq.s32.totalorder %s21, 1
      %p117 = por %p115, %p116
      %p119 = scmp.ne.s32.totalorder %s104, %s118
      %p120 = scmp.eq.s32.totalorder %s21, 0
      %p121 = por %p119, %p120
      %s123 = sadd.s32 %s122, 1
      %p126 = scmp.eq.s32.totalorder %s15, 1
      %p127 = scmp.ne.s32.totalorder %s122, %s124
      %p128 = scmp.eq.s32.totalorder %s15, 0
      %p129 = por %p127, %p128
      %p130 = scmp.ne.s32.totalorder %s122, %s124
      %p131 = scmp.eq.s32.totalorder %s20, 1
      %p132 = por %p130, %p131
      %p133 = scmp.ne.s32.totalorder %s124, %s125
      %p134 = scmp.eq.s32.totalorder %s20, 0
      %p135 = por %p133, %p134
      %p136 = scmp.ne.s32.totalorder %s124, %s125
      %p137 = scmp.eq.s32.totalorder %s21, 1
      %p138 = por %p136, %p137
      %p140 = scmp.ne.s32.totalorder %s125, %s139
      %p141 = scmp.eq.s32.totalorder %s21, 0
      %p142 = por %p140, %p141
      %s144 = sadd.s32 %s143, 1
      %p147 = scmp.eq.s32.totalorder %s15, 1
      %p148 = scmp.ne.s32.totalorder %s143, %s145
      %p149 = scmp.eq.s32.totalorder %s15, 0
      %p150 = por %p148, %p149
      %p151 = scmp.ne.s32.totalorder %s143, %s145
      %p152 = scmp.eq.s32.totalorder %s20, 1
      %p153 = por %p151, %p152
      %p154 = scmp.ne.s32.totalorder %s145, %s146
      %p155 = scmp.eq.s32.totalorder %s20, 0
      %p156 = por %p154, %p155
      %p157 = scmp.ne.s32.totalorder %s145, %s146
      %p158 = scmp.eq.s32.totalorder %s21, 1
      %p159 = por %p157, %p158
      %p161 = scmp.ne.s32.totalorder %s146, %s160
      %p162 = scmp.eq.s32.totalorder %s21, 0
      %p163 = por %p161, %p162
      %s164 = ssub.s32 %s15, %s22
      %p165 = scmp.eq.s32.totalorder %s164, 0
      %s167 = sadd.s32 %s166, 1
      %s168 = scalar_select %p165, %s166, %s167
      %p171 = pneg %p165
      %p172 = scmp.eq.s32.totalorder %s15, 1
      %p173 = por %p171, %p172
      %p174 = scmp.ne.s32.totalorder %s166, %s169
      %p175 = scmp.eq.s32.totalorder %s15, 0
      %p176 = por %p174, %p175
      %p177 = scmp.ne.s32.totalorder %s166, %s169
      %p178 = scmp.eq.s32.totalorder %s20, 1
      %p179 = por %p177, %p178
      %p180 = scmp.ne.s32.totalorder %s169, %s170
      %p181 = scmp.eq.s32.totalorder %s20, 0
      %p182 = por %p180, %p181
      %p183 = scmp.ne.s32.totalorder %s169, %s170
      %p184 = scmp.eq.s32.totalorder %s21, 1
      %p185 = por %p183, %p184
      %p187 = scmp.ne.s32.totalorder %s170, %s186
      %p188 = scmp.eq.s32.totalorder %s21, 0
      %p189 = por %p187, %p188
      %p190 = scmp.le.s32.totalorder 1, %s15
      %p191 = scmp.lt.s32.totalorder %s15, 3
      %p192 = pnand %p190, %p191
      %p193 = pneg %p192
      // Predicated region
      $region9: #{pret_attention.1} parent=5 // pred_check
        _
      $region10: #{pret_attention.1} parent=5 // pred_check_branch
        %195 = sbr.rel (%p192) target = $region12
      $region11: #{pret_attention.1} parent=5 // pred_region
        %s196 = ssub.s32 %s15, 1
        // Predicated region
        $region13: #{pret_attention.1} parent=11 // pred_check
          %p197 = pneg %p114
        $region14: #{pret_attention.1} parent=11 // pred_check_branch
          %199 = sbr.rel (%p197) target = $region16
        $region15: #{pret_attention.1} parent=11 // pred_region
          _
        $region16: #{pret_attention.1} parent=11 // pred_fallthru
          _
        // Predicated region
        $region17: #{pret_attention.1} parent=11 // pred_check
          %p200 = pneg %p135
        $region18: #{pret_attention.1} parent=11 // pred_check_branch
          %202 = sbr.rel (%p200) target = $region20
        $region19: #{pret_attention.1} parent=11 // pred_region
          _
        $region20: #{pret_attention.1} parent=11 // pred_fallthru
          _
        // Predicated region
        $region21: #{pret_attention.1} parent=11 // pred_check
          %p203 = pneg %p156
        $region22: #{pret_attention.1} parent=11 // pred_check_branch
          %205 = sbr.rel (%p203) target = $region24
        $region23: #{pret_attention.1} parent=11 // pred_region
          _
        $region24: #{pret_attention.1} parent=11 // pred_fallthru
          _
      $region12: #{pret_attention.1} parent=5 // pred_fallthru
        _
      %p206 = scmp.lt.s32.totalorder %s15, 2
      // Predicated region
      $region25: #{pret_attention.1} parent=5 // pred_check
        %p207 = pneg %p206
      $region26: #{pret_attention.1} parent=5 // pred_check_branch
        %209 = sbr.rel (%p207) target = $region28
      $region27: #{pret_attention.1} parent=5 // pred_region
        // Predicated region
        $region29: #{pret_attention.1} parent=27 // pred_check
          %p210 = pneg %p35
        $region30: #{pret_attention.1} parent=27 // pred_check_branch
          %212 = sbr.rel (%p210) target = $region32
        $region31: #{pret_attention.1} parent=27 // pred_region
          %p213 = scmp.lt.s32.totalorder %s15, 1
          %s214 = scalar_select %p213, %s15, 1
          %s215 = smul.addr %s214, 8
          %s216 = scalar_lea.vmem %s0, %s215
        $region32: #{pret_attention.1} parent=27 // pred_fallthru
          _
        // Predicated region
        $region33: #{pret_attention.1} parent=27 // pred_check
          %p217 = pneg %p61
        $region34: #{pret_attention.1} parent=27 // pred_check_branch
          %219 = sbr.rel (%p217) target = $region36
        $region35: #{pret_attention.1} parent=27 // pred_region
          %p220 = scmp.lt.s32.totalorder %s15, 1
          %s221 = scalar_select %p220, %s15, 1
          %s222 = smul.addr %s221, 4
          %s223 = smul.addr %s222, 4
          %s224 = scalar_lea.vmem %s1, %s223
        $region36: #{pret_attention.1} parent=27 // pred_fallthru
          _
        // Predicated region
        $region37: #{pret_attention.1} parent=27 // pred_check
          %p225 = pneg %p87
        $region38: #{pret_attention.1} parent=27 // pred_check_branch
          %227 = sbr.rel (%p225) target = $region40
        $region39: #{pret_attention.1} parent=27 // pred_region
          %p228 = scmp.lt.s32.totalorder %s15, 1
          %s229 = scalar_select %p228, %s15, 1
          %s230 = smul.addr %s229, 4
          %s231 = smul.addr %s230, 4
          %s232 = scalar_lea.vmem %s2, %s231
        $region40: #{pret_attention.1} parent=27 // pred_fallthru
          _
      $region28: #{pret_attention.1} parent=5 // pred_fallthru
        _
      %p233 = scmp.le.s32.totalorder 1, %s15
      %p234 = scmp.lt.s32.totalorder %s15, 3
      %p235 = pnand %p233, %p234
      %p236 = pneg %p235
      // Predicated region
      $region41: #{pret_attention.1} parent=5 // pred_check
        _
      $region42: #{pret_attention.1} parent=5 // pred_check_branch
        %238 = sbr.rel (%p235) target = $region44
      $region43: #{pret_attention.1} parent=5 // pred_region
        %s239 = ssub.s32 %s15, 1
        %p240 = scmp.lt.s32.totalorder %s20, 1
        %s241 = scalar_select %p240, %s20, 1
        %s242 = smul.addr %s241, 8
        %s243 = scalar_lea.vmem %s0, %s242
        %p244 = pneg %p41
        %p245 = pneg %p38
        %p246 = scmp.lt.s32.totalorder %s20, 1
        %s247 = scalar_select %p246, %s20, 1
        %s248 = smul.addr %s247, 4
        %s249 = smul.addr %s248, 4
        %s250 = scalar_lea.vmem %s1, %s249
        %p251 = pneg %p67
        %p252 = pneg %p64
        %p253 = scmp.lt.s32.totalorder %s20, 1
        %s254 = scalar_select %p253, %s20, 1
        %s255 = smul.addr %s254, 4
        %s256 = smul.addr %s255, 4
        %s257 = scalar_lea.vmem %s2, %s256
        %p258 = pneg %p93
        %p259 = pneg %p90
        %p260 = pneg %p114
        %p261 = pneg %p111
        %p262 = pneg %p135
        %p263 = pneg %p132
        %p264 = pneg %p156
        %p265 = pneg %p153
        %p266 = pneg %p182
        %p267 = pneg %p179
        %s268 = sand.u32 %s169, 1
        %s269 = scalar_lea.sflag [#allocation3], %s268
        %s270 = sand.u32 %s169, 1
        %s271 = smul.addr %s270, 8
        %s272 = scalar_lea.vmem [#allocation2], %s271
        %p273 = scmp.lt.s32.totalorder %s20, 1
        %s274 = scalar_select %p273, %s20, 1
        %s275 = smul.addr %s274, 8
        %s276 = scalar_lea.vmem %s0, %s275
        %p277 = scmp.lt.s32.totalorder %s20, 1
        %s278 = scalar_select %p277, %s20, 1
        %s279 = smul.addr %s278, 4
        %s280 = smul.addr %s279, 4
        %s281 = scalar_lea.vmem %s1, %s280
        %p282 = scmp.lt.s32.totalorder %s20, 1
        %s283 = scalar_select %p282, %s20, 1
        %s284 = smul.addr %s283, 4
        %s285 = smul.addr %s284, 4
        %s286 = scalar_lea.vmem %s2, %s285
        %v287 = vld [vmem:[%s276] sm:$0xff]
        %v288 = vld [vmem:[%s3] sm:$0xff]
        %v289 = vld [vmem:[%s3 + $0x8] sm:$0xff]
        %v290 = vld [vmem:[%s3 + $0x10] sm:$0xff]
        %v291 = vld [vmem:[%s3 + $0x18] sm:$0xff]
        %vm292 = vcmask 261120
        %v294 = vsel %vm292, %v287, 0
        %296 = vmatprep.subr.mxu0 0.0
        %297 = vmatpush1.msra.mxu0 %v288
        %298 = vmatprep.subr.mxu0 0.0
        %299 = vmatpush1.msra.mxu0 %v289
        %300 = vmatprep.subr.mxu0 0.0
        %301 = vmatpush1.msra.mxu0 %v290
        %302 = vmatprep.subr.mxu0 0.0
        %303 = vmatpush1.msra.mxu0 %v291
        %304 = vmatprep.subr.mxu0 0.0
        %305 = vmatpush1.msra.mxu0 0.0
        %306 = vmatprep.subr.mxu0 0.0
        %307 = vmatpush1.msra.mxu0 0.0
        %308 = vmatprep.subr.mxu0 0.0
        %309 = vmatpush1.msra.mxu0 0.0
        %310 = vmatprep.subr.mxu0 0.0
        %311 = vmatpush1.msra.mxu0 0.0
        %312 = vmatprep.subr.mxu0 0.0
        %313 = vmatpush1.msra.mxu0 0.0
        %314 = vmatprep.subr.mxu0 0.0
        %315 = vmatpush1.msra.mxu0 0.0
        %316 = vmatprep.subr.mxu0 0.0
        %317 = vmatpush1.msra.mxu0 0.0
        %318 = vmatprep.subr.mxu0 0.0
        %319 = vmatpush1.msra.mxu0 0.0
        %320 = vmatprep.subr.mxu0 0.0
        %321 = vmatpush1.msra.mxu0 0.0
        %322 = vmatprep.subr.mxu0 0.0
        %323 = vmatpush1.msra.mxu0 0.0
        %324 = vmatprep.subr.mxu0 0.0
        %325 = vmatpush1.msra.mxu0 0.0
        %326 = vmatprep.subr.mxu0 0.0
        %327 = vmatpush1.msra.mxu0 0.0
        %328 = vmatprep.subr.mxu0 0.0
        %329 = vmatpush1.msra.mxu0 0.0
        %330 = vmatprep.subr.mxu0 0.0
        %331 = vmatpush1.msra.mxu0 0.0
        %332 = vmatprep.subr.mxu0 0.0
        %333 = vmatpush1.msra.mxu0 0.0
        %334 = vmatprep.subr.mxu0 0.0
        %335 = vmatpush1.msra.mxu0 0.0
        %336 = vmatprep.subr.mxu0 0.0
        %337 = vmatpush1.msra.mxu0 0.0
        %338 = vmatprep.subr.mxu0 0.0
        %339 = vmatpush1.msra.mxu0 0.0
        %340 = vmatprep.subr.mxu0 0.0
        %341 = vmatpush1.msra.mxu0 0.0
        %342 = vmatprep.subr.mxu0 0.0
        %343 = vmatpush1.msra.mxu0 0.0
        %344 = vmatprep.subr.mxu0 0.0
        %345 = vmatpush1.msra.mxu0 0.0
        %346 = vmatprep.subr.mxu0 0.0
        %347 = vmatpush1.msra.mxu0 0.0
        %348 = vmatprep.subr.mxu0 0.0
        %349 = vmatpush1.msra.mxu0 0.0
        %350 = vmatprep.subr.mxu0 0.0
        %351 = vmatpush1.msra.mxu0 0.0
        %352 = vmatprep.subr.mxu0 0.0
        %353 = vmatpush1.msra.mxu0 0.0
        %354 = vmatprep.subr.mxu0 0.0
        %355 = vmatpush1.msra.mxu0 0.0
        %356 = vmatprep.subr.mxu0 0.0
        %357 = vmatpush1.msra.mxu0 0.0
        %358 = vmatprep.subr.mxu0 0.0
        %359 = vmatpush1.msra.mxu0 0.0
        %360 = vmatprep.mubr.f32.mxu0 0.0
        %361 = vmatmul.mubr.f32.gmra.mrb[0].mxu0 %v294
        %v362 = vpop.f32.mrb[0].mxu0
        %v363 = vadd.f32 0.0, %v362
        %v364 = vpop.f32.mrb[0].mxu0
        %365 = vdwg.mxu0
        %v366 = vmul.f32 %v363, 0.35355338
        %368 = vrot.lane.b32.xlu0 %v366, 120
        %v369 = vpop.permute.xlu0 %368
        %371 = vrot.lane.b32.xlu0 %v366, 112
        %v372 = vpop.permute.xlu0 %371
        %374 = vrot.lane.b32.xlu0 %v366, 104
        %v375 = vpop.permute.xlu0 %374
        %v377 = vcombine.low %v366, %v372
        %v378 = vcombine.high %v366, %v372
        %v380 = vunpack.c.l.s4 1983009808
        %v381 = vunpack.c.0.s8 %v380
        %v382 = vlaneseq
        %v383 = vshrl.u32 %v382, 7
        %v384 = vsub.s32 %v381, %v383
        %v385 = vrot.slane %v377, %v384
        %v387 = vunpack.c.l.s4 1983009808
        %v388 = vunpack.c.0.s8 %v387
        %v389 = vlaneseq
        %v390 = vshrl.u32 %v389, 7
        %v391 = vsub.s32 %v388, %v390
        %v392 = vrot.slane %v378, %v391
        %v393 = vcombine.low %v369, %v375
        %v394 = vcombine.high %v369, %v375
        %v396 = vunpack.c.l.s4 1983009808
        %v397 = vunpack.c.0.s8 %v396
        %v398 = vlaneseq
        %v399 = vshrl.u32 %v398, 7
        %v400 = vsub.s32 %v397, %v399
        %v401 = vrot.slane %v393, %v400
        %v403 = vunpack.c.l.s4 1983009808
        %v404 = vunpack.c.0.s8 %v403
        %v405 = vlaneseq
        %v406 = vshrl.u32 %v405, 7
        %v407 = vsub.s32 %v404, %v406
        %v408 = vrot.slane %v394, %v407
        %v409 = vcombine.low %v385, %v401
        %v410 = vcombine.high %v385, %v401
        %v412 = vunpack.c.l.s4 1934713408
        %v413 = vunpack.c.0.s8 %v412
        %v414 = vlaneseq
        %v415 = vshrl.u32 %v414, 7
        %v416 = vsub.s32 %v413, %v415
        %v417 = vrot.slane %v409, %v416
        %v419 = vunpack.c.l.s4 1934713408
        %v420 = vunpack.c.0.s8 %v419
        %v421 = vlaneseq
        %v422 = vshrl.u32 %v421, 7
        %v423 = vsub.s32 %v420, %v422
        %v424 = vrot.slane %v410, %v423
        %v425 = vcombine.low %v392, %v408
        %v426 = vcombine.high %v392, %v408
        %v428 = vunpack.c.l.s4 1934713408
        %v429 = vunpack.c.0.s8 %v428
        %v430 = vlaneseq
        %v431 = vshrl.u32 %v430, 7
        %v432 = vsub.s32 %v429, %v431
        %v433 = vrot.slane %v425, %v432
        %v435 = vunpack.c.l.s4 1934713408
        %v436 = vunpack.c.0.s8 %v435
        %v437 = vlaneseq
        %v438 = vshrl.u32 %v437, 7
        %v439 = vsub.s32 %v436, %v438
        %v440 = vrot.slane %v426, %v439
        %v441 = vcombine.high %v417, 0.0
        %v442 = vcombine.high %v424, 0.0
        %v443 = vcombine.high %v433, 0.0
        %v444 = vcombine.high %v440, 0.0
        %v445 = vcombine.low %v417, %v424
        %v447 = vunpack.c.l.s4 1983009808
        %v448 = vunpack.c.0.s8 %v447
        %v449 = vlaneseq
        %v450 = vshrl.u32 %v449, 7
        %v451 = vsub.s32 %v448, %v450
        %v452 = vrot.slane %v445, %v451
        %v453 = vcombine.low %v441, %v442
        %v455 = vunpack.c.l.s4 1983009808
        %v456 = vunpack.c.0.s8 %v455
        %v457 = vlaneseq
        %v458 = vshrl.u32 %v457, 7
        %v459 = vsub.s32 %v456, %v458
        %v460 = vrot.slane %v453, %v459
        %v461 = vcombine.low %v433, %v440
        %v463 = vunpack.c.l.s4 1983009808
        %v464 = vunpack.c.0.s8 %v463
        %v465 = vlaneseq
        %v466 = vshrl.u32 %v465, 7
        %v467 = vsub.s32 %v464, %v466
        %v468 = vrot.slane %v461, %v467
        %v469 = vcombine.low %v443, %v444
        %v471 = vunpack.c.l.s4 1983009808
        %v472 = vunpack.c.0.s8 %v471
        %v473 = vlaneseq
        %v474 = vshrl.u32 %v473, 7
        %v475 = vsub.s32 %v472, %v474
        %v476 = vrot.slane %v469, %v475
        %v477 = vcombine.low %v452, %v460
        %v478 = vcombine.high %v452, %v460
        %v480 = vunpack.c.l.s4 1934713408
        %v481 = vunpack.c.0.s8 %v480
        %v482 = vlaneseq
        %v483 = vshrl.u32 %v482, 7
        %v484 = vsub.s32 %v481, %v483
        %v485 = vrot.slane %v477, %v484
        %v487 = vunpack.c.l.s4 1934713408
        %v488 = vunpack.c.0.s8 %v487
        %v489 = vlaneseq
        %v490 = vshrl.u32 %v489, 7
        %v491 = vsub.s32 %v488, %v490
        %v492 = vrot.slane %v478, %v491
        %v493 = vcombine.low %v468, %v476
        %v494 = vcombine.high %v468, %v476
        %v496 = vunpack.c.l.s4 1934713408
        %v497 = vunpack.c.0.s8 %v496
        %v498 = vlaneseq
        %v499 = vshrl.u32 %v498, 7
        %v500 = vsub.s32 %v497, %v499
        %v501 = vrot.slane %v493, %v500
        %v503 = vunpack.c.l.s4 1934713408
        %v504 = vunpack.c.0.s8 %v503
        %v505 = vlaneseq
        %v506 = vshrl.u32 %v505, 7
        %v507 = vsub.s32 %v504, %v506
        %v508 = vrot.slane %v494, %v507
        %v509 = vcombine.low %v485, %v501
        %v510 = vcombine.high %v485, %v501
        %v511 = vcombine.low %v492, %v508
        %v512 = vcombine.high %v492, %v508
        %514 = vrot.lane.b32.xlu0 %v363, 120
        %v515 = vpop.permute.xlu0 %514
        %516 = vrot.lane.b32.xlu0 %v363, 112
        %v517 = vpop.permute.xlu0 %516
        %518 = vrot.lane.b32.xlu0 %v363, 104
        %v519 = vpop.permute.xlu0 %518
        %520 = vrot.lane.b32.xlu0 %v363, 96
        %v521 = vpop.permute.xlu0 %520
        %522 = vrot.lane.b32.xlu0 %v515, 96
        %v523 = vpop.permute.xlu0 %522
        %524 = vrot.lane.b32.xlu0 %v517, 96
        %v525 = vpop.permute.xlu0 %524
        %526 = vrot.lane.b32.xlu0 %v519, 96
        %v527 = vpop.permute.xlu0 %526
        %v532 = vcombine.low %v521, %v525
        %v533 = vcombine.high %v521, %v525
        %v535 = vunpack.c.l.s4 1983009808
        %v536 = vunpack.c.0.s8 %v535
        %v537 = vlaneseq
        %v538 = vshrl.u32 %v537, 7
        %v539 = vsub.s32 %v536, %v538
        %v540 = vrot.slane %v532, %v539
        %v542 = vunpack.c.l.s4 1983009808
        %v543 = vunpack.c.0.s8 %v542
        %v544 = vlaneseq
        %v545 = vshrl.u32 %v544, 7
        %v546 = vsub.s32 %v543, %v545
        %v547 = vrot.slane %v533, %v546
        %v548 = vcombine.low %v523, %v527
        %v549 = vcombine.high %v523, %v527
        %v551 = vunpack.c.l.s4 1983009808
        %v552 = vunpack.c.0.s8 %v551
        %v553 = vlaneseq
        %v554 = vshrl.u32 %v553, 7
        %v555 = vsub.s32 %v552, %v554
        %v556 = vrot.slane %v548, %v555
        %v558 = vunpack.c.l.s4 1983009808
        %v559 = vunpack.c.0.s8 %v558
        %v560 = vlaneseq
        %v561 = vshrl.u32 %v560, 7
        %v562 = vsub.s32 %v559, %v561
        %v563 = vrot.slane %v549, %v562
        %v564 = vcombine.low %v540, %v556
        %v565 = vcombine.high %v540, %v556
        %v567 = vunpack.c.l.s4 1934713408
        %v568 = vunpack.c.0.s8 %v567
        %v569 = vlaneseq
        %v570 = vshrl.u32 %v569, 7
        %v571 = vsub.s32 %v568, %v570
        %v572 = vrot.slane %v564, %v571
        %v574 = vunpack.c.l.s4 1934713408
        %v575 = vunpack.c.0.s8 %v574
        %v576 = vlaneseq
        %v577 = vshrl.u32 %v576, 7
        %v578 = vsub.s32 %v575, %v577
        %v579 = vrot.slane %v565, %v578
        %v580 = vcombine.low %v547, %v563
        %v581 = vcombine.high %v547, %v563
        %v583 = vunpack.c.l.s4 1934713408
        %v584 = vunpack.c.0.s8 %v583
        %v585 = vlaneseq
        %v586 = vshrl.u32 %v585, 7
        %v587 = vsub.s32 %v584, %v586
        %v588 = vrot.slane %v580, %v587
        %v590 = vunpack.c.l.s4 1934713408
        %v591 = vunpack.c.0.s8 %v590
        %v592 = vlaneseq
        %v593 = vshrl.u32 %v592, 7
        %v594 = vsub.s32 %v591, %v593
        %v595 = vrot.slane %v581, %v594
        %v596 = vcombine.high %v572, 0.0
        %v597 = vcombine.high %v579, 0.0
        %v598 = vcombine.high %v588, 0.0
        %v599 = vcombine.high %v595, 0.0
        %v600 = vcombine.low %v572, %v579
        %v602 = vunpack.c.l.s4 1983009808
        %v603 = vunpack.c.0.s8 %v602
        %v604 = vlaneseq
        %v605 = vshrl.u32 %v604, 7
        %v606 = vsub.s32 %v603, %v605
        %v607 = vrot.slane %v600, %v606
        %v608 = vcombine.low %v596, %v597
        %v610 = vunpack.c.l.s4 1983009808
        %v611 = vunpack.c.0.s8 %v610
        %v612 = vlaneseq
        %v613 = vshrl.u32 %v612, 7
        %v614 = vsub.s32 %v611, %v613
        %v615 = vrot.slane %v608, %v614
        %v616 = vcombine.low %v588, %v595
        %v618 = vunpack.c.l.s4 1983009808
        %v619 = vunpack.c.0.s8 %v618
        %v620 = vlaneseq
        %v621 = vshrl.u32 %v620, 7
        %v622 = vsub.s32 %v619, %v621
        %v623 = vrot.slane %v616, %v622
        %v624 = vcombine.low %v598, %v599
        %v626 = vunpack.c.l.s4 1983009808
        %v627 = vunpack.c.0.s8 %v626
        %v628 = vlaneseq
        %v629 = vshrl.u32 %v628, 7
        %v630 = vsub.s32 %v627, %v629
        %v631 = vrot.slane %v624, %v630
        %v632 = vcombine.low %v607, %v615
        %v633 = vcombine.high %v607, %v615
        %v635 = vunpack.c.l.s4 1934713408
        %v636 = vunpack.c.0.s8 %v635
        %v637 = vlaneseq
        %v638 = vshrl.u32 %v637, 7
        %v639 = vsub.s32 %v636, %v638
        %v640 = vrot.slane %v632, %v639
        %v642 = vunpack.c.l.s4 1934713408
        %v643 = vunpack.c.0.s8 %v642
        %v644 = vlaneseq
        %v645 = vshrl.u32 %v644, 7
        %v646 = vsub.s32 %v643, %v645
        %v647 = vrot.slane %v633, %v646
        %v648 = vcombine.low %v623, %v631
        %v649 = vcombine.high %v623, %v631
        %v651 = vunpack.c.l.s4 1934713408
        %v652 = vunpack.c.0.s8 %v651
        %v653 = vlaneseq
        %v654 = vshrl.u32 %v653, 7
        %v655 = vsub.s32 %v652, %v654
        %v656 = vrot.slane %v648, %v655
        %v658 = vunpack.c.l.s4 1934713408
        %v659 = vunpack.c.0.s8 %v658
        %v660 = vlaneseq
        %v661 = vshrl.u32 %v660, 7
        %v662 = vsub.s32 %v659, %v661
        %v663 = vrot.slane %v649, %v662
        %v664 = vcombine.low %v640, %v656
        %v665 = vcombine.high %v640, %v656
        %v666 = vcombine.low %v647, %v663
        %v667 = vcombine.high %v647, %v663
        %668 = vrot.lane.b32.xlu0 %v363, 64
        %v669 = vpop.permute.xlu0 %668
        %670 = vrot.lane.b32.xlu0 %v515, 64
        %v671 = vpop.permute.xlu0 %670
        %672 = vrot.lane.b32.xlu0 %v517, 64
        %v673 = vpop.permute.xlu0 %672
        %674 = vrot.lane.b32.xlu0 %v519, 64
        %v675 = vpop.permute.xlu0 %674
        %v680 = vcombine.low %v669, %v673
        %v681 = vcombine.high %v669, %v673
        %v683 = vunpack.c.l.s4 1983009808
        %v684 = vunpack.c.0.s8 %v683
        %v685 = vlaneseq
        %v686 = vshrl.u32 %v685, 7
        %v687 = vsub.s32 %v684, %v686
        %v688 = vrot.slane %v680, %v687
        %v690 = vunpack.c.l.s4 1983009808
        %v691 = vunpack.c.0.s8 %v690
        %v692 = vlaneseq
        %v693 = vshrl.u32 %v692, 7
        %v694 = vsub.s32 %v691, %v693
        %v695 = vrot.slane %v681, %v694
        %v696 = vcombine.low %v671, %v675
        %v697 = vcombine.high %v671, %v675
        %v699 = vunpack.c.l.s4 1983009808
        %v700 = vunpack.c.0.s8 %v699
        %v701 = vlaneseq
        %v702 = vshrl.u32 %v701, 7
        %v703 = vsub.s32 %v700, %v702
        %v704 = vrot.slane %v696, %v703
        %v706 = vunpack.c.l.s4 1983009808
        %v707 = vunpack.c.0.s8 %v706
        %v708 = vlaneseq
        %v709 = vshrl.u32 %v708, 7
        %v710 = vsub.s32 %v707, %v709
        %v711 = vrot.slane %v697, %v710
        %v712 = vcombine.low %v688, %v704
        %v713 = vcombine.high %v688, %v704
        %v715 = vunpack.c.l.s4 1934713408
        %v716 = vunpack.c.0.s8 %v715
        %v717 = vlaneseq
        %v718 = vshrl.u32 %v717, 7
        %v719 = vsub.s32 %v716, %v718
        %v720 = vrot.slane %v712, %v719
        %v722 = vunpack.c.l.s4 1934713408
        %v723 = vunpack.c.0.s8 %v722
        %v724 = vlaneseq
        %v725 = vshrl.u32 %v724, 7
        %v726 = vsub.s32 %v723, %v725
        %v727 = vrot.slane %v713, %v726
        %v728 = vcombine.low %v695, %v711
        %v729 = vcombine.high %v695, %v711
        %v731 = vunpack.c.l.s4 1934713408
        %v732 = vunpack.c.0.s8 %v731
        %v733 = vlaneseq
        %v734 = vshrl.u32 %v733, 7
        %v735 = vsub.s32 %v732, %v734
        %v736 = vrot.slane %v728, %v735
        %v738 = vunpack.c.l.s4 1934713408
        %v739 = vunpack.c.0.s8 %v738
        %v740 = vlaneseq
        %v741 = vshrl.u32 %v740, 7
        %v742 = vsub.s32 %v739, %v741
        %v743 = vrot.slane %v729, %v742
        %v744 = vcombine.high %v720, 0.0
        %v745 = vcombine.high %v727, 0.0
        %v746 = vcombine.high %v736, 0.0
        %v747 = vcombine.high %v743, 0.0
        %v748 = vcombine.low %v720, %v727
        %v750 = vunpack.c.l.s4 1983009808
        %v751 = vunpack.c.0.s8 %v750
        %v752 = vlaneseq
        %v753 = vshrl.u32 %v752, 7
        %v754 = vsub.s32 %v751, %v753
        %v755 = vrot.slane %v748, %v754
        %v756 = vcombine.low %v744, %v745
        %v758 = vunpack.c.l.s4 1983009808
        %v759 = vunpack.c.0.s8 %v758
        %v760 = vlaneseq
        %v761 = vshrl.u32 %v760, 7
        %v762 = vsub.s32 %v759, %v761
        %v763 = vrot.slane %v756, %v762
        %v764 = vcombine.low %v736, %v743
        %v766 = vunpack.c.l.s4 1983009808
        %v767 = vunpack.c.0.s8 %v766
        %v768 = vlaneseq
        %v769 = vshrl.u32 %v768, 7
        %v770 = vsub.s32 %v767, %v769
        %v771 = vrot.slane %v764, %v770
        %v772 = vcombine.low %v746, %v747
        %v774 = vunpack.c.l.s4 1983009808
        %v775 = vunpack.c.0.s8 %v774
        %v776 = vlaneseq
        %v777 = vshrl.u32 %v776, 7
        %v778 = vsub.s32 %v775, %v777
        %v779 = vrot.slane %v772, %v778
        %v780 = vcombine.low %v755, %v763
        %v781 = vcombine.high %v755, %v763
        %v783 = vunpack.c.l.s4 1934713408
        %v784 = vunpack.c.0.s8 %v783
        %v785 = vlaneseq
        %v786 = vshrl.u32 %v785, 7
        %v787 = vsub.s32 %v784, %v786
        %v788 = vrot.slane %v780, %v787
        %v790 = vunpack.c.l.s4 1934713408
        %v791 = vunpack.c.0.s8 %v790
        %v792 = vlaneseq
        %v793 = vshrl.u32 %v792, 7
        %v794 = vsub.s32 %v791, %v793
        %v795 = vrot.slane %v781, %v794
        %v796 = vcombine.low %v771, %v779
        %v797 = vcombine.high %v771, %v779
        %v799 = vunpack.c.l.s4 1934713408
        %v800 = vunpack.c.0.s8 %v799
        %v801 = vlaneseq
        %v802 = vshrl.u32 %v801, 7
        %v803 = vsub.s32 %v800, %v802
        %v804 = vrot.slane %v796, %v803
        %v806 = vunpack.c.l.s4 1934713408
        %v807 = vunpack.c.0.s8 %v806
        %v808 = vlaneseq
        %v809 = vshrl.u32 %v808, 7
        %v810 = vsub.s32 %v807, %v809
        %v811 = vrot.slane %v797, %v810
        %v812 = vcombine.low %v788, %v804
        %v813 = vcombine.high %v788, %v804
        %v814 = vcombine.low %v795, %v811
        %v815 = vcombine.high %v795, %v811
        %v816 = vld [vmem:[%s281] sm:$0xf]
        %v817 = vld [vmem:[%s281 + $0x4] sm:$0xf]
        %v818 = vld [vmem:[%s281 + $0x8] sm:$0xf]
        %v819 = vld [vmem:[%s281 + $0xc] sm:$0xf]
        %v820 = vld [vmem:[%s286] sm:$0xf]
        %v821 = vld [vmem:[%s286 + $0x4] sm:$0xf]
        %v822 = vld [vmem:[%s286 + $0x8] sm:$0xf]
        %v823 = vld [vmem:[%s286 + $0xc] sm:$0xf]
        %vm824 = vcmask 64512
        %v826 = vsel %vm824, %v509, 0
        %v829 = vsel %vm824, %v816, 0
        %831 = vmatprep.subr.mxu0 0.0
        %832 = vmatpush1.xpose.msra.mxu0 %v829
        %833 = vmatprep.subr.mxu0 0.0
        %834 = vmatpush1.xpose.msra.mxu0 0.0
        %835 = vmatprep.subr.mxu0 0.0
        %836 = vmatpush1.xpose.msra.mxu0 0.0
        %837 = vmatprep.subr.mxu0 0.0
        %838 = vmatpush1.xpose.msra.mxu0 0.0
        %839 = vmatprep.subr.mxu0 0.0
        %840 = vmatpush1.xpose.msra.mxu0 0.0
        %841 = vmatprep.subr.mxu0 0.0
        %842 = vmatpush1.xpose.msra.mxu0 0.0
        %843 = vmatprep.subr.mxu0 0.0
        %844 = vmatpush1.xpose.msra.mxu0 0.0
        %845 = vmatprep.subr.mxu0 0.0
        %846 = vmatpush1.xpose.msra.mxu0 0.0
        %847 = vmatprep.subr.mxu0 0.0
        %848 = vmatpush1.xpose.msra.mxu0 0.0
        %849 = vmatprep.subr.mxu0 0.0
        %850 = vmatpush1.xpose.msra.mxu0 0.0
        %851 = vmatprep.subr.mxu0 0.0
        %852 = vmatpush1.xpose.msra.mxu0 0.0
        %853 = vmatprep.subr.mxu0 0.0
        %854 = vmatpush1.xpose.msra.mxu0 0.0
        %855 = vmatprep.subr.mxu0 0.0
        %856 = vmatpush1.xpose.msra.mxu0 0.0
        %857 = vmatprep.subr.mxu0 0.0
        %858 = vmatpush1.xpose.msra.mxu0 0.0
        %859 = vmatprep.subr.mxu0 0.0
        %860 = vmatpush1.xpose.msra.mxu0 0.0
        %861 = vmatprep.subr.mxu0 0.0
        %862 = vmatpush1.xpose.msra.mxu0 0.0
        %863 = vmatprep.subr.mxu0 0.0
        %864 = vmatpush1.xpose.msra.mxu0 0.0
        %865 = vmatprep.subr.mxu0 0.0
        %866 = vmatpush1.xpose.msra.mxu0 0.0
        %867 = vmatprep.subr.mxu0 0.0
        %868 = vmatpush1.xpose.msra.mxu0 0.0
        %869 = vmatprep.subr.mxu0 0.0
        %870 = vmatpush1.xpose.msra.mxu0 0.0
        %871 = vmatprep.subr.mxu0 0.0
        %872 = vmatpush1.xpose.msra.mxu0 0.0
        %873 = vmatprep.subr.mxu0 0.0
        %874 = vmatpush1.xpose.msra.mxu0 0.0
        %875 = vmatprep.subr.mxu0 0.0
        %876 = vmatpush1.xpose.msra.mxu0 0.0
        %877 = vmatprep.subr.mxu0 0.0
        %878 = vmatpush1.xpose.msra.mxu0 0.0
        %879 = vmatprep.subr.mxu0 0.0
        %880 = vmatpush1.xpose.msra.mxu0 0.0
        %881 = vmatprep.subr.mxu0 0.0
        %882 = vmatpush1.xpose.msra.mxu0 0.0
        %883 = vmatprep.subr.mxu0 0.0
        %884 = vmatpush1.xpose.msra.mxu0 0.0
        %885 = vmatprep.subr.mxu0 0.0
        %886 = vmatpush1.xpose.msra.mxu0 0.0
        %887 = vmatprep.subr.mxu0 0.0
        %888 = vmatpush1.xpose.msra.mxu0 0.0
        %889 = vmatprep.subr.mxu0 0.0
        %890 = vmatpush1.xpose.msra.mxu0 0.0
        %891 = vmatprep.subr.mxu0 0.0
        %892 = vmatpush1.xpose.msra.mxu0 0.0
        %893 = vmatprep.subr.mxu0 0.0
        %894 = vmatpush1.xpose.msra.mxu0 0.0
        %895 = vmatprep.mubr.f32.mxu0 0.0
        %896 = vmatmul.mubr.f32.gmra.mrb[0].mxu0 %v826
        %v897 = vpop.f32.mrb[0].mxu0
        %v898 = vadd.f32 0.0, %v897
        %v899 = vpop.f32.mrb[0].mxu0
        %900 = vdwg.mxu0
        %v902 = vsel %vm824, %v510, 0
        %v905 = vsel %vm824, %v817, 0
        %907 = vmatprep.subr.mxu0 0.0
        %908 = vmatpush1.xpose.msra.mxu0 %v905
        %909 = vmatprep.subr.mxu0 0.0
        %910 = vmatpush1.xpose.msra.mxu0 0.0
        %911 = vmatprep.subr.mxu0 0.0
        %912 = vmatpush1.xpose.msra.mxu0 0.0
        %913 = vmatprep.subr.mxu0 0.0
        %914 = vmatpush1.xpose.msra.mxu0 0.0
        %915 = vmatprep.subr.mxu0 0.0
        %916 = vmatpush1.xpose.msra.mxu0 0.0
        %917 = vmatprep.subr.mxu0 0.0
        %918 = vmatpush1.xpose.msra.mxu0 0.0
        %919 = vmatprep.subr.mxu0 0.0
        %920 = vmatpush1.xpose.msra.mxu0 0.0
        %921 = vmatprep.subr.mxu0 0.0
        %922 = vmatpush1.xpose.msra.mxu0 0.0
        %923 = vmatprep.subr.mxu0 0.0
        %924 = vmatpush1.xpose.msra.mxu0 0.0
        %925 = vmatprep.subr.mxu0 0.0
        %926 = vmatpush1.xpose.msra.mxu0 0.0
        %927 = vmatprep.subr.mxu0 0.0
        %928 = vmatpush1.xpose.msra.mxu0 0.0
        %929 = vmatprep.subr.mxu0 0.0
        %930 = vmatpush1.xpose.msra.mxu0 0.0
        %931 = vmatprep.subr.mxu0 0.0
        %932 = vmatpush1.xpose.msra.mxu0 0.0
        %933 = vmatprep.subr.mxu0 0.0
        %934 = vmatpush1.xpose.msra.mxu0 0.0
        %935 = vmatprep.subr.mxu0 0.0
        %936 = vmatpush1.xpose.msra.mxu0 0.0
        %937 = vmatprep.subr.mxu0 0.0
        %938 = vmatpush1.xpose.msra.mxu0 0.0
        %939 = vmatprep.subr.mxu0 0.0
        %940 = vmatpush1.xpose.msra.mxu0 0.0
        %941 = vmatprep.subr.mxu0 0.0
        %942 = vmatpush1.xpose.msra.mxu0 0.0
        %943 = vmatprep.subr.mxu0 0.0
        %944 = vmatpush1.xpose.msra.mxu0 0.0
        %945 = vmatprep.subr.mxu0 0.0
        %946 = vmatpush1.xpose.msra.mxu0 0.0
        %947 = vmatprep.subr.mxu0 0.0
        %948 = vmatpush1.xpose.msra.mxu0 0.0
        %949 = vmatprep.subr.mxu0 0.0
        %950 = vmatpush1.xpose.msra.mxu0 0.0
        %951 = vmatprep.subr.mxu0 0.0
        %952 = vmatpush1.xpose.msra.mxu0 0.0
        %953 = vmatprep.subr.mxu0 0.0
        %954 = vmatpush1.xpose.msra.mxu0 0.0
        %955 = vmatprep.subr.mxu0 0.0
        %956 = vmatpush1.xpose.msra.mxu0 0.0
        %957 = vmatprep.subr.mxu0 0.0
        %958 = vmatpush1.xpose.msra.mxu0 0.0
        %959 = vmatprep.subr.mxu0 0.0
        %960 = vmatpush1.xpose.msra.mxu0 0.0
        %961 = vmatprep.subr.mxu0 0.0
        %962 = vmatpush1.xpose.msra.mxu0 0.0
        %963 = vmatprep.subr.mxu0 0.0
        %964 = vmatpush1.xpose.msra.mxu0 0.0
        %965 = vmatprep.subr.mxu0 0.0
        %966 = vmatpush1.xpose.msra.mxu0 0.0
        %967 = vmatprep.subr.mxu0 0.0
        %968 = vmatpush1.xpose.msra.mxu0 0.0
        %969 = vmatprep.subr.mxu0 0.0
        %970 = vmatpush1.xpose.msra.mxu0 0.0
        %971 = vmatprep.mubr.f32.mxu0 0.0
        %972 = vmatmul.mubr.f32.gmra.mrb[0].mxu0 %v902
        %v973 = vpop.f32.mrb[0].mxu0
        %v974 = vadd.f32 0.0, %v973
        %v975 = vpop.f32.mrb[0].mxu0
        %976 = vdwg.mxu0
        %v978 = vsel %vm824, %v511, 0
        %v981 = vsel %vm824, %v818, 0
        %983 = vmatprep.subr.mxu0 0.0
        %984 = vmatpush1.xpose.msra.mxu0 %v981
        %985 = vmatprep.subr.mxu0 0.0
        %986 = vmatpush1.xpose.msra.mxu0 0.0
        %987 = vmatprep.subr.mxu0 0.0
        %988 = vmatpush1.xpose.msra.mxu0 0.0
        %989 = vmatprep.subr.mxu0 0.0
        %990 = vmatpush1.xpose.msra.mxu0 0.0
        %991 = vmatprep.subr.mxu0 0.0
        %992 = vmatpush1.xpose.msra.mxu0 0.0
        %993 = vmatprep.subr.mxu0 0.0
        %994 = vmatpush1.xpose.msra.mxu0 0.0
        %995 = vmatprep.subr.mxu0 0.0
        %996 = vmatpush1.xpose.msra.mxu0 0.0
        %997 = vmatprep.subr.mxu0 0.0
        %998 = vmatpush1.xpose.msra.mxu0 0.0
        %999 = vmatprep.subr.mxu0 0.0
        %1000 = vmatpush1.xpose.msra.mxu0 0.0
        %1001 = vmatprep.subr.mxu0 0.0
        %1002 = vmatpush1.xpose.msra.mxu0 0.0
        %1003 = vmatprep.subr.mxu0 0.0
        %1004 = vmatpush1.xpose.msra.mxu0 0.0
        %1005 = vmatprep.subr.mxu0 0.0
        %1006 = vmatpush1.xpose.msra.mxu0 0.0
        %1007 = vmatprep.subr.mxu0 0.0
        %1008 = vmatpush1.xpose.msra.mxu0 0.0
        %1009 = vmatprep.subr.mxu0 0.0
        %1010 = vmatpush1.xpose.msra.mxu0 0.0
        %1011 = vmatprep.subr.mxu0 0.0
        %1012 = vmatpush1.xpose.msra.mxu0 0.0
        %1013 = vmatprep.subr.mxu0 0.0
        %1014 = vmatpush1.xpose.msra.mxu0 0.0
        %1015 = vmatprep.subr.mxu0 0.0
        %1016 = vmatpush1.xpose.msra.mxu0 0.0
        %1017 = vmatprep.subr.mxu0 0.0
        %1018 = vmatpush1.xpose.msra.mxu0 0.0
        %1019 = vmatprep.subr.mxu0 0.0
        %1020 = vmatpush1.xpose.msra.mxu0 0.0
        %1021 = vmatprep.subr.mxu0 0.0
        %1022 = vmatpush1.xpose.msra.mxu0 0.0
        %1023 = vmatprep.subr.mxu0 0.0
        %1024 = vmatpush1.xpose.msra.mxu0 0.0
        %1025 = vmatprep.subr.mxu0 0.0
        %1026 = vmatpush1.xpose.msra.mxu0 0.0
        %1027 = vmatprep.subr.mxu0 0.0
        %1028 = vmatpush1.xpose.msra.mxu0 0.0
        %1029 = vmatprep.subr.mxu0 0.0
        %1030 = vmatpush1.xpose.msra.mxu0 0.0
        %1031 = vmatprep.subr.mxu0 0.0
        %1032 = vmatpush1.xpose.msra.mxu0 0.0
        %1033 = vmatprep.subr.mxu0 0.0
        %1034 = vmatpush1.xpose.msra.mxu0 0.0
        %1035 = vmatprep.subr.mxu0 0.0
        %1036 = vmatpush1.xpose.msra.mxu0 0.0
        %1037 = vmatprep.subr.mxu0 0.0
        %1038 = vmatpush1.xpose.msra.mxu0 0.0
        %1039 = vmatprep.subr.mxu0 0.0
        %1040 = vmatpush1.xpose.msra.mxu0 0.0
        %1041 = vmatprep.subr.mxu0 0.0
        %1042 = vmatpush1.xpose.msra.mxu0 0.0
        %1043 = vmatprep.subr.mxu0 0.0
        %1044 = vmatpush1.xpose.msra.mxu0 0.0
        %1045 = vmatprep.subr.mxu0 0.0
        %1046 = vmatpush1.xpose.msra.mxu0 0.0
        %1047 = vmatprep.mubr.f32.mxu0 0.0
        %1048 = vmatmul.mubr.f32.gmra.mrb[0].mxu0 %v978
        %v1049 = vpop.f32.mrb[0].mxu0
        %v1050 = vadd.f32 0.0, %v1049
        %v1051 = vpop.f32.mrb[0].mxu0
        %1052 = vdwg.mxu0
        %v1054 = vsel %vm824, %v512, 0
        %v1057 = vsel %vm824, %v819, 0
        %1059 = vmatprep.subr.mxu0 0.0
        %1060 = vmatpush1.xpose.msra.mxu0 %v1057
        %1061 = vmatprep.subr.mxu0 0.0
        %1062 = vmatpush1.xpose.msra.mxu0 0.0
        %1063 = vmatprep.subr.mxu0 0.0
        %1064 = vmatpush1.xpose.msra.mxu0 0.0
        %1065 = vmatprep.subr.mxu0 0.0
        %1066 = vmatpush1.xpose.msra.mxu0 0.0
        %1067 = vmatprep.subr.mxu0 0.0
        %1068 = vmatpush1.xpose.msra.mxu0 0.0
        %1069 = vmatprep.subr.mxu0 0.0
        %1070 = vmatpush1.xpose.msra.mxu0 0.0
        %1071 = vmatprep.subr.mxu0 0.0
        %1072 = vmatpush1.xpose.msra.mxu0 0.0
        %1073 = vmatprep.subr.mxu0 0.0
        %1074 = vmatpush1.xpose.msra.mxu0 0.0
        %1075 = vmatprep.subr.mxu0 0.0
        %1076 = vmatpush1.xpose.msra.mxu0 0.0
        %1077 = vmatprep.subr.mxu0 0.0
        %1078 = vmatpush1.xpose.msra.mxu0 0.0
        %1079 = vmatprep.subr.mxu0 0.0
        %1080 = vmatpush1.xpose.msra.mxu0 0.0
        %1081 = vmatprep.subr.mxu0 0.0
        %1082 = vmatpush1.xpose.msra.mxu0 0.0
        %1083 = vmatprep.subr.mxu0 0.0
        %1084 = vmatpush1.xpose.msra.mxu0 0.0
        %1085 = vmatprep.subr.mxu0 0.0
        %1086 = vmatpush1.xpose.msra.mxu0 0.0
        %1087 = vmatprep.subr.mxu0 0.0
        %1088 = vmatpush1.xpose.msra.mxu0 0.0
        %1089 = vmatprep.subr.mxu0 0.0
        %1090 = vmatpush1.xpose.msra.mxu0 0.0
        %1091 = vmatprep.subr.mxu0 0.0
        %1092 = vmatpush1.xpose.msra.mxu0 0.0
        %1093 = vmatprep.subr.mxu0 0.0
        %1094 = vmatpush1.xpose.msra.mxu0 0.0
        %1095 = vmatprep.subr.mxu0 0.0
        %1096 = vmatpush1.xpose.msra.mxu0 0.0
        %1097 = vmatprep.subr.mxu0 0.0
        %1098 = vmatpush1.xpose.msra.mxu0 0.0
        %1099 = vmatprep.subr.mxu0 0.0
        %1100 = vmatpush1.xpose.msra.mxu0 0.0
        %1101 = vmatprep.subr.mxu0 0.0
        %1102 = vmatpush1.xpose.msra.mxu0 0.0
        %1103 = vmatprep.subr.mxu0 0.0
        %1104 = vmatpush1.xpose.msra.mxu0 0.0
        %1105 = vmatprep.subr.mxu0 0.0
        %1106 = vmatpush1.xpose.msra.mxu0 0.0
        %1107 = vmatprep.subr.mxu0 0.0
        %1108 = vmatpush1.xpose.msra.mxu0 0.0
        %1109 = vmatprep.subr.mxu0 0.0
        %1110 = vmatpush1.xpose.msra.mxu0 0.0
        %1111 = vmatprep.subr.mxu0 0.0
        %1112 = vmatpush1.xpose.msra.mxu0 0.0
        %1113 = vmatprep.subr.mxu0 0.0
        %1114 = vmatpush1.xpose.msra.mxu0 0.0
        %1115 = vmatprep.subr.mxu0 0.0
        %1116 = vmatpush1.xpose.msra.mxu0 0.0
        %1117 = vmatprep.subr.mxu0 0.0
        %1118 = vmatpush1.xpose.msra.mxu0 0.0
        %1119 = vmatprep.subr.mxu0 0.0
        %1120 = vmatpush1.xpose.msra.mxu0 0.0
        %1121 = vmatprep.subr.mxu0 0.0
        %1122 = vmatpush1.xpose.msra.mxu0 0.0
        %1123 = vmatprep.mubr.f32.mxu0 0.0
        %1124 = vmatmul.mubr.f32.gmra.mrb[0].mxu0 %v1054
        %v1125 = vpop.f32.mrb[0].mxu0
        %v1126 = vadd.f32 0.0, %v1125
        %v1127 = vpop.f32.mrb[0].mxu0
        %1128 = vdwg.mxu0
        %v1130 = vsel %vm824, %v664, 0
        %1132 = vmatprep.subr.mxu0 0.0
        %1133 = vmatpush1.xpose.msra.mxu0 %v1130
        %1134 = vmatprep.subr.mxu0 0.0
        %1135 = vmatpush1.xpose.msra.mxu0 0.0
        %1136 = vmatprep.subr.mxu0 0.0
        %1137 = vmatpush1.xpose.msra.mxu0 0.0
        %1138 = vmatprep.subr.mxu0 0.0
        %1139 = vmatpush1.xpose.msra.mxu0 0.0
        %1140 = vmatprep.subr.mxu0 0.0
        %1141 = vmatpush1.xpose.msra.mxu0 0.0
        %1142 = vmatprep.subr.mxu0 0.0
        %1143 = vmatpush1.xpose.msra.mxu0 0.0
        %1144 = vmatprep.subr.mxu0 0.0
        %1145 = vmatpush1.xpose.msra.mxu0 0.0
        %1146 = vmatprep.subr.mxu0 0.0
        %1147 = vmatpush1.xpose.msra.mxu0 0.0
        %1148 = vmatprep.subr.mxu0 0.0
        %1149 = vmatpush1.xpose.msra.mxu0 0.0
        %1150 = vmatprep.subr.mxu0 0.0
        %1151 = vmatpush1.xpose.msra.mxu0 0.0
        %1152 = vmatprep.subr.mxu0 0.0
        %1153 = vmatpush1.xpose.msra.mxu0 0.0
        %1154 = vmatprep.subr.mxu0 0.0
        %1155 = vmatpush1.xpose.msra.mxu0 0.0
        %1156 = vmatprep.subr.mxu0 0.0
        %1157 = vmatpush1.xpose.msra.mxu0 0.0
        %1158 = vmatprep.subr.mxu0 0.0
        %1159 = vmatpush1.xpose.msra.mxu0 0.0
        %1160 = vmatprep.subr.mxu0 0.0
        %1161 = vmatpush1.xpose.msra.mxu0 0.0
        %1162 = vmatprep.subr.mxu0 0.0
        %1163 = vmatpush1.xpose.msra.mxu0 0.0
        %1164 = vmatprep.subr.mxu0 0.0
        %1165 = vmatpush1.xpose.msra.mxu0 0.0
        %1166 = vmatprep.subr.mxu0 0.0
        %1167 = vmatpush1.xpose.msra.mxu0 0.0
        %1168 = vmatprep.subr.mxu0 0.0
        %1169 = vmatpush1.xpose.msra.mxu0 0.0
        %1170 = vmatprep.subr.mxu0 0.0
        %1171 = vmatpush1.xpose.msra.mxu0 0.0
        %1172 = vmatprep.subr.mxu0 0.0
        %1173 = vmatpush1.xpose.msra.mxu0 0.0
        %1174 = vmatprep.subr.mxu0 0.0
        %1175 = vmatpush1.xpose.msra.mxu0 0.0
        %1176 = vmatprep.subr.mxu0 0.0
        %1177 = vmatpush1.xpose.msra.mxu0 0.0
        %1178 = vmatprep.subr.mxu0 0.0
        %1179 = vmatpush1.xpose.msra.mxu0 0.0
        %1180 = vmatprep.subr.mxu0 0.0
        %1181 = vmatpush1.xpose.msra.mxu0 0.0
        %1182 = vmatprep.subr.mxu0 0.0
        %1183 = vmatpush1.xpose.msra.mxu0 0.0
        %1184 = vmatprep.subr.mxu0 0.0
        %1185 = vmatpush1.xpose.msra.mxu0 0.0
        %1186 = vmatprep.subr.mxu0 0.0
        %1187 = vmatpush1.xpose.msra.mxu0 0.0
        %1188 = vmatprep.subr.mxu0 0.0
        %1189 = vmatpush1.xpose.msra.mxu0 0.0
        %1190 = vmatprep.subr.mxu0 0.0
        %1191 = vmatpush1.xpose.msra.mxu0 0.0
        %1192 = vmatprep.subr.mxu0 0.0
        %1193 = vmatpush1.xpose.msra.mxu0 0.0
        %1194 = vmatprep.subr.mxu0 0.0
        %1195 = vmatpush1.xpose.msra.mxu0 0.0
        %1196 = vmatprep.mubr.f32.mxu0 0.0
        %1197 = vmatmul.mubr.f32.gmra.mrb[0].mxu0 %v826
        %v1198 = vpop.f32.mrb[0].mxu0
        %v1199 = vadd.f32 0.0, %v1198
        %v1200 = vpop.f32.mrb[0].mxu0
        %1201 = vdwg.mxu0
        %v1203 = vsel %vm824, %v665, 0
        %1205 = vmatprep.subr.mxu0 0.0
        %1206 = vmatpush1.xpose.msra.mxu0 %v1203
        %1207 = vmatprep.subr.mxu0 0.0
        %1208 = vmatpush1.xpose.msra.mxu0 0.0
        %1209 = vmatprep.subr.mxu0 0.0
        %1210 = vmatpush1.xpose.msra.mxu0 0.0
        %1211 = vmatprep.subr.mxu0 0.0
        %1212 = vmatpush1.xpose.msra.mxu0 0.0
        %1213 = vmatprep.subr.mxu0 0.0
        %1214 = vmatpush1.xpose.msra.mxu0 0.0
        %1215 = vmatprep.subr.mxu0 0.0
        %1216 = vmatpush1.xpose.msra.mxu0 0.0
        %1217 = vmatprep.subr.mxu0 0.0
        %1218 = vmatpush1.xpose.msra.mxu0 0.0
        %1219 = vmatprep.subr.mxu0 0.0
        %1220 = vmatpush1.xpose.msra.mxu0 0.0
        %1221 = vmatprep.subr.mxu0 0.0
        %1222 = vmatpush1.xpose.msra.mxu0 0.0
        %1223 = vmatprep.subr.mxu0 0.0
        %1224 = vmatpush1.xpose.msra.mxu0 0.0
        %1225 = vmatprep.subr.mxu0 0.0
        %1226 = vmatpush1.xpose.msra.mxu0 0.0
        %1227 = vmatprep.subr.mxu0 0.0
        %1228 = vmatpush1.xpose.msra.mxu0 0.0
        %1229 = vmatprep.subr.mxu0 0.0
        %1230 = vmatpush1.xpose.msra.mxu0 0.0
        %1231 = vmatprep.subr.mxu0 0.0
        %1232 = vmatpush1.xpose.msra.mxu0 0.0
        %1233 = vmatprep.subr.mxu0 0.0
        %1234 = vmatpush1.xpose.msra.mxu0 0.0
        %1235 = vmatprep.subr.mxu0 0.0
        %1236 = vmatpush1.xpose.msra.mxu0 0.0
        %1237 = vmatprep.subr.mxu0 0.0
        %1238 = vmatpush1.xpose.msra.mxu0 0.0
        %1239 = vmatprep.subr.mxu0 0.0
        %1240 = vmatpush1.xpose.msra.mxu0 0.0
        %1241 = vmatprep.subr.mxu0 0.0
        %1242 = vmatpush1.xpose.msra.mxu0 0.0
        %1243 = vmatprep.subr.mxu0 0.0
        %1244 = vmatpush1.xpose.msra.mxu0 0.0
        %1245 = vmatprep.subr.mxu0 0.0
        %1246 = vmatpush1.xpose.msra.mxu0 0.0
        %1247 = vmatprep.subr.mxu0 0.0
        %1248 = vmatpush1.xpose.msra.mxu0 0.0
        %1249 = vmatprep.subr.mxu0 0.0
        %1250 = vmatpush1.xpose.msra.mxu0 0.0
        %1251 = vmatprep.subr.mxu0 0.0
        %1252 = vmatpush1.xpose.msra.mxu0 0.0
        %1253 = vmatprep.subr.mxu0 0.0
        %1254 = vmatpush1.xpose.msra.mxu0 0.0
        %1255 = vmatprep.subr.mxu0 0.0
        %1256 = vmatpush1.xpose.msra.mxu0 0.0
        %1257 = vmatprep.subr.mxu0 0.0
        %1258 = vmatpush1.xpose.msra.mxu0 0.0
        %1259 = vmatprep.subr.mxu0 0.0
        %1260 = vmatpush1.xpose.msra.mxu0 0.0
        %1261 = vmatprep.subr.mxu0 0.0
        %1262 = vmatpush1.xpose.msra.mxu0 0.0
        %1263 = vmatprep.subr.mxu0 0.0
        %1264 = vmatpush1.xpose.msra.mxu0 0.0
        %1265 = vmatprep.subr.mxu0 0.0
        %1266 = vmatpush1.xpose.msra.mxu0 0.0
        %1267 = vmatprep.subr.mxu0 0.0
        %1268 = vmatpush1.xpose.msra.mxu0 0.0
        %1269 = vmatprep.mubr.f32.mxu0 0.0
        %1270 = vmatmul.mubr.f32.gmra.mrb[0].mxu0 %v902
        %v1271 = vpop.f32.mrb[0].mxu0
        %v1272 = vadd.f32 0.0, %v1271
        %v1273 = vpop.f32.mrb[0].mxu0
        %1274 = vdwg.mxu0
        %v1276 = vsel %vm824, %v666, 0
        %1278 = vmatprep.subr.mxu0 0.0
        %1279 = vmatpush1.xpose.msra.mxu0 %v1276
        %1280 = vmatprep.subr.mxu0 0.0
        %1281 = vmatpush1.xpose.msra.mxu0 0.0
        %1282 = vmatprep.subr.mxu0 0.0
        %1283 = vmatpush1.xpose.msra.mxu0 0.0
        %1284 = vmatprep.subr.mxu0 0.0
        %1285 = vmatpush1.xpose.msra.mxu0 0.0
        %1286 = vmatprep.subr.mxu0 0.0
        %1287 = vmatpush1.xpose.msra.mxu0 0.0
        %1288 = vmatprep.subr.mxu0 0.0
        %1289 = vmatpush1.xpose.msra.mxu0 0.0
        %1290 = vmatprep.subr.mxu0 0.0
        %1291 = vmatpush1.xpose.msra.mxu0 0.0
        %1292 = vmatprep.subr.mxu0 0.0
        %1293 = vmatpush1.xpose.msra.mxu0 0.0
        %1294 = vmatprep.subr.mxu0 0.0
        %1295 = vmatpush1.xpose.msra.mxu0 0.0
        %1296 = vmatprep.subr.mxu0 0.0
        %1297 = vmatpush1.xpose.msra.mxu0 0.0
        %1298 = vmatprep.subr.mxu0 0.0
        %1299 = vmatpush1.xpose.msra.mxu0 0.0
        %1300 = vmatprep.subr.mxu0 0.0
        %1301 = vmatpush1.xpose.msra.mxu0 0.0
        %1302 = vmatprep.subr.mxu0 0.0
        %1303 = vmatpush1.xpose.msra.mxu0 0.0
        %1304 = vmatprep.subr.mxu0 0.0
        %1305 = vmatpush1.xpose.msra.mxu0 0.0
        %1306 = vmatprep.subr.mxu0 0.0
        %1307 = vmatpush1.xpose.msra.mxu0 0.0
        %1308 = vmatprep.subr.mxu0 0.0
        %1309 = vmatpush1.xpose.msra.mxu0 0.0
        %1310 = vmatprep.subr.mxu0 0.0
        %1311 = vmatpush1.xpose.msra.mxu0 0.0
        %1312 = vmatprep.subr.mxu0 0.0
        %1313 = vmatpush1.xpose.msra.mxu0 0.0
        %1314 = vmatprep.subr.mxu0 0.0
        %1315 = vmatpush1.xpose.msra.mxu0 0.0
        %1316 = vmatprep.subr.mxu0 0.0
        %1317 = vmatpush1.xpose.msra.mxu0 0.0
        %1318 = vmatprep.subr.mxu0 0.0
        %1319 = vmatpush1.xpose.msra.mxu0 0.0
        %1320 = vmatprep.subr.mxu0 0.0
        %1321 = vmatpush1.xpose.msra.mxu0 0.0
        %1322 = vmatprep.subr.mxu0 0.0
        %1323 = vmatpush1.xpose.msra.mxu0 0.0
        %1324 = vmatprep.subr.mxu0 0.0
        %1325 = vmatpush1.xpose.msra.mxu0 0.0
        %1326 = vmatprep.subr.mxu0 0.0
        %1327 = vmatpush1.xpose.msra.mxu0 0.0
        %1328 = vmatprep.subr.mxu0 0.0
        %1329 = vmatpush1.xpose.msra.mxu0 0.0
        %1330 = vmatprep.subr.mxu0 0.0
        %1331 = vmatpush1.xpose.msra.mxu0 0.0
        %1332 = vmatprep.subr.mxu0 0.0
        %1333 = vmatpush1.xpose.msra.mxu0 0.0
        %1334 = vmatprep.subr.mxu0 0.0
        %1335 = vmatpush1.xpose.msra.mxu0 0.0
        %1336 = vmatprep.subr.mxu0 0.0
        %1337 = vmatpush1.xpose.msra.mxu0 0.0
        %1338 = vmatprep.subr.mxu0 0.0
        %1339 = vmatpush1.xpose.msra.mxu0 0.0
        %1340 = vmatprep.subr.mxu0 0.0
        %1341 = vmatpush1.xpose.msra.mxu0 0.0
        %1342 = vmatprep.mubr.f32.mxu0 0.0
        %1343 = vmatmul.mubr.f32.gmra.mrb[0].mxu0 %v978
        %v1344 = vpop.f32.mrb[0].mxu0
        %v1345 = vadd.f32 0.0, %v1344
        %v1346 = vpop.f32.mrb[0].mxu0
        %1347 = vdwg.mxu0
        %v1349 = vsel %vm824, %v667, 0
        %1351 = vmatprep.subr.mxu0 0.0
        %1352 = vmatpush1.xpose.msra.mxu0 %v1349
        %1353 = vmatprep.subr.mxu0 0.0
        %1354 = vmatpush1.xpose.msra.mxu0 0.0
        %1355 = vmatprep.subr.mxu0 0.0
        %1356 = vmatpush1.xpose.msra.mxu0 0.0
        %1357 = vmatprep.subr.mxu0 0.0
        %1358 = vmatpush1.xpose.msra.mxu0 0.0
        %1359 = vmatprep.subr.mxu0 0.0
        %1360 = vmatpush1.xpose.msra.mxu0 0.0
        %1361 = vmatprep.subr.mxu0 0.0
        %1362 = vmatpush1.xpose.msra.mxu0 0.0
        %1363 = vmatprep.subr.mxu0 0.0
        %1364 = vmatpush1.xpose.msra.mxu0 0.0
        %1365 = vmatprep.subr.mxu0 0.0
        %1366 = vmatpush1.xpose.msra.mxu0 0.0
        %1367 = vmatprep.subr.mxu0 0.0
        %1368 = vmatpush1.xpose.msra.mxu0 0.0
        %1369 = vmatprep.subr.mxu0 0.0
        %1370 = vmatpush1.xpose.msra.mxu0 0.0
        %1371 = vmatprep.subr.mxu0 0.0
        %1372 = vmatpush1.xpose.msra.mxu0 0.0
        %1373 = vmatprep.subr.mxu0 0.0
        %1374 = vmatpush1.xpose.msra.mxu0 0.0
        %1375 = vmatprep.subr.mxu0 0.0
        %1376 = vmatpush1.xpose.msra.mxu0 0.0
        %1377 = vmatprep.subr.mxu0 0.0
        %1378 = vmatpush1.xpose.msra.mxu0 0.0
        %1379 = vmatprep.subr.mxu0 0.0
        %1380 = vmatpush1.xpose.msra.mxu0 0.0
        %1381 = vmatprep.subr.mxu0 0.0
        %1382 = vmatpush1.xpose.msra.mxu0 0.0
        %1383 = vmatprep.subr.mxu0 0.0
        %1384 = vmatpush1.xpose.msra.mxu0 0.0
        %1385 = vmatprep.subr.mxu0 0.0
        %1386 = vmatpush1.xpose.msra.mxu0 0.0
        %1387 = vmatprep.subr.mxu0 0.0
        %1388 = vmatpush1.xpose.msra.mxu0 0.0
        %1389 = vmatprep.subr.mxu0 0.0
        %1390 = vmatpush1.xpose.msra.mxu0 0.0
        %1391 = vmatprep.subr.mxu0 0.0
        %1392 = vmatpush1.xpose.msra.mxu0 0.0
        %1393 = vmatprep.subr.mxu0 0.0
        %1394 = vmatpush1.xpose.msra.mxu0 0.0
        %1395 = vmatprep.subr.mxu0 0.0
        %1396 = vmatpush1.xpose.msra.mxu0 0.0
        %1397 = vmatprep.subr.mxu0 0.0
        %1398 = vmatpush1.xpose.msra.mxu0 0.0
        %1399 = vmatprep.subr.mxu0 0.0
        %1400 = vmatpush1.xpose.msra.mxu0 0.0
        %1401 = vmatprep.subr.mxu0 0.0
        %1402 = vmatpush1.xpose.msra.mxu0 0.0
        %1403 = vmatprep.subr.mxu0 0.0
        %1404 = vmatpush1.xpose.msra.mxu0 0.0
        %1405 = vmatprep.subr.mxu0 0.0
        %1406 = vmatpush1.xpose.msra.mxu0 0.0
        %1407 = vmatprep.subr.mxu0 0.0
        %1408 = vmatpush1.xpose.msra.mxu0 0.0
        %1409 = vmatprep.subr.mxu0 0.0
        %1410 = vmatpush1.xpose.msra.mxu0 0.0
        %1411 = vmatprep.subr.mxu0 0.0
        %1412 = vmatpush1.xpose.msra.mxu0 0.0
        %1413 = vmatprep.subr.mxu0 0.0
        %1414 = vmatpush1.xpose.msra.mxu0 0.0
        %1415 = vmatprep.mubr.f32.mxu0 0.0
        %1416 = vmatmul.mubr.f32.gmra.mrb[0].mxu0 %v1054
        %v1417 = vpop.f32.mrb[0].mxu0
        %v1418 = vadd.f32 0.0, %v1417
        %v1419 = vpop.f32.mrb[0].mxu0
        %1420 = vdwg.mxu0
        %vm1421 = vcmask 31744
        %v1422 = vsel %vm1421, %v898, -inf
        %1423 = vmax.xlane.f32.xlu0 %v1422
        %v1424 = vpop.xlane.xlu0 %1423
        %v1425 = vsel %vm1421, %v974, -inf
        %1426 = vmax.xlane.f32.xlu0 %v1425
        %v1427 = vpop.xlane.xlu0 %1426
        %v1428 = vsel %vm1421, %v1050, -inf
        %1429 = vmax.xlane.f32.xlu0 %v1428
        %v1430 = vpop.xlane.xlu0 %1429
        %v1431 = vsel %vm1421, %v1126, -inf
        %1432 = vmax.xlane.f32.xlu0 %v1431
        %v1433 = vpop.xlane.xlu0 %1432
        %v1434 = vsel %vm824, %v1199, -inf
        %1435 = vmax.xlane.f32.xlu0 %v1434
        %v1436 = vpop.xlane.xlu0 %1435
        %v1437 = vsel %vm824, %v1272, -inf
        %1438 = vmax.xlane.f32.xlu0 %v1437
        %v1439 = vpop.xlane.xlu0 %1438
        %v1440 = vsel %vm824, %v1345, -inf
        %1441 = vmax.xlane.f32.xlu0 %v1440
        %v1442 = vpop.xlane.xlu0 %1441
        %v1443 = vsel %vm824, %v1418, -inf
        %1444 = vmax.xlane.f32.xlu0 %v1443
        %v1445 = vpop.xlane.xlu0 %1444
        %v1446 = vmax.f32 %v1424, %v1436
        %v1447 = vmax.f32 %v1427, %v1439
        %v1448 = vmax.f32 %v1430, %v1442
        %v1449 = vmax.f32 %v1433, %v1445
        %v1450 = vsub.f32 %v898, %v1446
        %v1451 = vsub.f32 %v974, %v1447
        %v1452 = vsub.f32 %v1050, %v1448
        %v1453 = vsub.f32 %v1126, %v1449
        %v1454 = vmul.f32 %v1450, 1.442695
        %v1455 = vpow.pop %v1454
        %v1456 = vmul.f32 %v1451, 1.442695
        %v1457 = vpow.pop %v1456
        %v1458 = vmul.f32 %v1452, 1.442695
        %v1459 = vpow.pop %v1458
        %v1460 = vmul.f32 %v1453, 1.442695
        %v1461 = vpow.pop %v1460
        %v1462 = vsub.f32 %v1199, %v1446
        %v1463 = vsub.f32 %v1272, %v1447
        %v1464 = vsub.f32 %v1345, %v1448
        %v1465 = vsub.f32 %v1418, %v1449
        %v1466 = vmul.f32 %v1462, 1.442695
        %v1467 = vpow.pop %v1466
        %v1468 = vmul.f32 %v1463, 1.442695
        %v1469 = vpow.pop %v1468
        %v1470 = vmul.f32 %v1464, 1.442695
        %v1471 = vpow.pop %v1470
        %v1472 = vmul.f32 %v1465, 1.442695
        %v1473 = vpow.pop %v1472
        %v1474 = vsel %vm1421, %v1455, 0.0
        %1475 = vadd.xlane.f32.xlu0 %v1474
        %v1476 = vpop.xlane.xlu0 %1475
        %v1477 = vsel %vm1421, %v1457, 0.0
        %1478 = vadd.xlane.f32.xlu0 %v1477
        %v1479 = vpop.xlane.xlu0 %1478
        %v1480 = vsel %vm1421, %v1459, 0.0
        %1481 = vadd.xlane.f32.xlu0 %v1480
        %v1482 = vpop.xlane.xlu0 %1481
        %v1483 = vsel %vm1421, %v1461, 0.0
        %1484 = vadd.xlane.f32.xlu0 %v1483
        %v1485 = vpop.xlane.xlu0 %1484
        %v1486 = vsel %vm824, %v1467, 0.0
        %1487 = vadd.xlane.f32.xlu0 %v1486
        %v1488 = vpop.xlane.xlu0 %1487
        %v1489 = vsel %vm824, %v1469, 0.0
        %1490 = vadd.xlane.f32.xlu0 %v1489
        %v1491 = vpop.xlane.xlu0 %1490
        %v1492 = vsel %vm824, %v1471, 0.0
        %1493 = vadd.xlane.f32.xlu0 %v1492
        %v1494 = vpop.xlane.xlu0 %1493
        %v1495 = vsel %vm824, %v1473, 0.0
        %1496 = vadd.xlane.f32.xlu0 %v1495
        %v1497 = vpop.xlane.xlu0 %1496
        %v1498 = vadd.f32 %v1476, %v1488
        %v1499 = vadd.f32 %v1479, %v1491
        %v1500 = vadd.f32 %v1482, %v1494
        %v1501 = vadd.f32 %v1485, %v1497
        %v1502 = vrcp.pop %v1498
        %v1503 = vrcp.pop %v1499
        %v1504 = vrcp.pop %v1500
        %v1505 = vrcp.pop %v1501
        %v1507 = vsel %vm824, %v1467, 0
        %1509 = vmatprep.subr.mxu0 0.0
        %1510 = vmatpush1.msra.mxu0 %v812
        %1511 = vmatprep.subr.mxu0 0.0
        %1512 = vmatpush1.msra.mxu0 0.0
        %1513 = vmatprep.subr.mxu0 0.0
        %1514 = vmatpush1.msra.mxu0 0.0
        %1515 = vmatprep.subr.mxu0 0.0
        %1516 = vmatpush1.msra.mxu0 0.0
        %1517 = vmatprep.subr.mxu0 0.0
        %1518 = vmatpush1.msra.mxu0 0.0
        %1519 = vmatprep.subr.mxu0 0.0
        %1520 = vmatpush1.msra.mxu0 0.0
        %1521 = vmatprep.subr.mxu0 0.0
        %1522 = vmatpush1.msra.mxu0 0.0
        %1523 = vmatprep.subr.mxu0 0.0
        %1524 = vmatpush1.msra.mxu0 0.0
        %1525 = vmatprep.subr.mxu0 0.0
        %1526 = vmatpush1.msra.mxu0 0.0
        %1527 = vmatprep.subr.mxu0 0.0
        %1528 = vmatpush1.msra.mxu0 0.0
        %1529 = vmatprep.subr.mxu0 0.0
        %1530 = vmatpush1.msra.mxu0 0.0
        %1531 = vmatprep.subr.mxu0 0.0
        %1532 = vmatpush1.msra.mxu0 0.0
        %1533 = vmatprep.subr.mxu0 0.0
        %1534 = vmatpush1.msra.mxu0 0.0
        %1535 = vmatprep.subr.mxu0 0.0
        %1536 = vmatpush1.msra.mxu0 0.0
        %1537 = vmatprep.subr.mxu0 0.0
        %1538 = vmatpush1.msra.mxu0 0.0
        %1539 = vmatprep.subr.mxu0 0.0
        %1540 = vmatpush1.msra.mxu0 0.0
        %1541 = vmatprep.subr.mxu0 0.0
        %1542 = vmatpush1.msra.mxu0 0.0
        %1543 = vmatprep.subr.mxu0 0.0
        %1544 = vmatpush1.msra.mxu0 0.0
        %1545 = vmatprep.subr.mxu0 0.0
        %1546 = vmatpush1.msra.mxu0 0.0
        %1547 = vmatprep.subr.mxu0 0.0
        %1548 = vmatpush1.msra.mxu0 0.0
        %1549 = vmatprep.subr.mxu0 0.0
        %1550 = vmatpush1.msra.mxu0 0.0
        %1551 = vmatprep.subr.mxu0 0.0
        %1552 = vmatpush1.msra.mxu0 0.0
        %1553 = vmatprep.subr.mxu0 0.0
        %1554 = vmatpush1.msra.mxu0 0.0
        %1555 = vmatprep.subr.mxu0 0.0
        %1556 = vmatpush1.msra.mxu0 0.0
        %1557 = vmatprep.subr.mxu0 0.0
        %1558 = vmatpush1.msra.mxu0 0.0
        %1559 = vmatprep.subr.mxu0 0.0
        %1560 = vmatpush1.msra.mxu0 0.0
        %1561 = vmatprep.subr.mxu0 0.0
        %1562 = vmatpush1.msra.mxu0 0.0
        %1563 = vmatprep.subr.mxu0 0.0
        %1564 = vmatpush1.msra.mxu0 0.0
        %1565 = vmatprep.subr.mxu0 0.0
        %1566 = vmatpush1.msra.mxu0 0.0
        %1567 = vmatprep.subr.mxu0 0.0
        %1568 = vmatpush1.msra.mxu0 0.0
        %1569 = vmatprep.subr.mxu0 0.0
        %1570 = vmatpush1.msra.mxu0 0.0
        %1571 = vmatprep.subr.mxu0 0.0
        %1572 = vmatpush1.msra.mxu0 0.0
        %1573 = vmatprep.mubr.f32.mxu0 0.0
        %1574 = vmatmul.mubr.f32.gmra.mrb[0].mxu0 %v1507
        %v1575 = vpop.f32.mrb[0].mxu0
        %v1576 = vadd.f32 0.0, %v1575
        %v1577 = vpop.f32.mrb[0].mxu0
        %1578 = vdwg.mxu0
        %v1580 = vsel %vm824, %v1469, 0
        %1582 = vmatprep.subr.mxu0 0.0
        %1583 = vmatpush1.msra.mxu0 %v813
        %1584 = vmatprep.subr.mxu0 0.0
        %1585 = vmatpush1.msra.mxu0 0.0
        %1586 = vmatprep.subr.mxu0 0.0
        %1587 = vmatpush1.msra.mxu0 0.0
        %1588 = vmatprep.subr.mxu0 0.0
        %1589 = vmatpush1.msra.mxu0 0.0
        %1590 = vmatprep.subr.mxu0 0.0
        %1591 = vmatpush1.msra.mxu0 0.0
        %1592 = vmatprep.subr.mxu0 0.0
        %1593 = vmatpush1.msra.mxu0 0.0
        %1594 = vmatprep.subr.mxu0 0.0
        %1595 = vmatpush1.msra.mxu0 0.0
        %1596 = vmatprep.subr.mxu0 0.0
        %1597 = vmatpush1.msra.mxu0 0.0
        %1598 = vmatprep.subr.mxu0 0.0
        %1599 = vmatpush1.msra.mxu0 0.0
        %1600 = vmatprep.subr.mxu0 0.0
        %1601 = vmatpush1.msra.mxu0 0.0
        %1602 = vmatprep.subr.mxu0 0.0
        %1603 = vmatpush1.msra.mxu0 0.0
        %1604 = vmatprep.subr.mxu0 0.0
        %1605 = vmatpush1.msra.mxu0 0.0
        %1606 = vmatprep.subr.mxu0 0.0
        %1607 = vmatpush1.msra.mxu0 0.0
        %1608 = vmatprep.subr.mxu0 0.0
        %1609 = vmatpush1.msra.mxu0 0.0
        %1610 = vmatprep.subr.mxu0 0.0
        %1611 = vmatpush1.msra.mxu0 0.0
        %1612 = vmatprep.subr.mxu0 0.0
        %1613 = vmatpush1.msra.mxu0 0.0
        %1614 = vmatprep.subr.mxu0 0.0
        %1615 = vmatpush1.msra.mxu0 0.0
        %1616 = vmatprep.subr.mxu0 0.0
        %1617 = vmatpush1.msra.mxu0 0.0
        %1618 = vmatprep.subr.mxu0 0.0
        %1619 = vmatpush1.msra.mxu0 0.0
        %1620 = vmatprep.subr.mxu0 0.0
        %1621 = vmatpush1.msra.mxu0 0.0
        %1622 = vmatprep.subr.mxu0 0.0
        %1623 = vmatpush1.msra.mxu0 0.0
        %1624 = vmatprep.subr.mxu0 0.0
        %1625 = vmatpush1.msra.mxu0 0.0
        %1626 = vmatprep.subr.mxu0 0.0
        %1627 = vmatpush1.msra.mxu0 0.0
        %1628 = vmatprep.subr.mxu0 0.0
        %1629 = vmatpush1.msra.mxu0 0.0
        %1630 = vmatprep.subr.mxu0 0.0
        %1631 = vmatpush1.msra.mxu0 0.0
        %1632 = vmatprep.subr.mxu0 0.0
        %1633 = vmatpush1.msra.mxu0 0.0
        %1634 = vmatprep.subr.mxu0 0.0
        %1635 = vmatpush1.msra.mxu0 0.0
        %1636 = vmatprep.subr.mxu0 0.0
        %1637 = vmatpush1.msra.mxu0 0.0
        %1638 = vmatprep.subr.mxu0 0.0
        %1639 = vmatpush1.msra.mxu0 0.0
        %1640 = vmatprep.subr.mxu0 0.0
        %1641 = vmatpush1.msra.mxu0 0.0
        %1642 = vmatprep.subr.mxu0 0.0
        %1643 = vmatpush1.msra.mxu0 0.0
        %1644 = vmatprep.subr.mxu0 0.0
        %1645 = vmatpush1.msra.mxu0 0.0
        %1646 = vmatprep.mubr.f32.mxu0 0.0
        %1647 = vmatmul.mubr.f32.gmra.mrb[0].mxu0 %v1580
        %v1648 = vpop.f32.mrb[0].mxu0
        %v1649 = vadd.f32 0.0, %v1648
        %v1650 = vpop.f32.mrb[0].mxu0
        %1651 = vdwg.mxu0
        %v1653 = vsel %vm824, %v1471, 0
        %1655 = vmatprep.subr.mxu0 0.0
        %1656 = vmatpush1.msra.mxu0 %v814
        %1657 = vmatprep.subr.mxu0 0.0
        %1658 = vmatpush1.msra.mxu0 0.0
        %1659 = vmatprep.subr.mxu0 0.0
        %1660 = vmatpush1.msra.mxu0 0.0
        %1661 = vmatprep.subr.mxu0 0.0
        %1662 = vmatpush1.msra.mxu0 0.0
        %1663 = vmatprep.subr.mxu0 0.0
        %1664 = vmatpush1.msra.mxu0 0.0
        %1665 = vmatprep.subr.mxu0 0.0
        %1666 = vmatpush1.msra.mxu0 0.0
        %1667 = vmatprep.subr.mxu0 0.0
        %1668 = vmatpush1.msra.mxu0 0.0
        %1669 = vmatprep.subr.mxu0 0.0
        %1670 = vmatpush1.msra.mxu0 0.0
        %1671 = vmatprep.subr.mxu0 0.0
        %1672 = vmatpush1.msra.mxu0 0.0
        %1673 = vmatprep.subr.mxu0 0.0
        %1674 = vmatpush1.msra.mxu0 0.0
        %1675 = vmatprep.subr.mxu0 0.0
        %1676 = vmatpush1.msra.mxu0 0.0
        %1677 = vmatprep.subr.mxu0 0.0
        %1678 = vmatpush1.msra.mxu0 0.0
        %1679 = vmatprep.subr.mxu0 0.0
        %1680 = vmatpush1.msra.mxu0 0.0
        %1681 = vmatprep.subr.mxu0 0.0
        %1682 = vmatpush1.msra.mxu0 0.0
        %1683 = vmatprep.subr.mxu0 0.0
        %1684 = vmatpush1.msra.mxu0 0.0
        %1685 = vmatprep.subr.mxu0 0.0
        %1686 = vmatpush1.msra.mxu0 0.0
        %1687 = vmatprep.subr.mxu0 0.0
        %1688 = vmatpush1.msra.mxu0 0.0
        %1689 = vmatprep.subr.mxu0 0.0
        %1690 = vmatpush1.msra.mxu0 0.0
        %1691 = vmatprep.subr.mxu0 0.0
        %1692 = vmatpush1.msra.mxu0 0.0
        %1693 = vmatprep.subr.mxu0 0.0
        %1694 = vmatpush1.msra.mxu0 0.0
        %1695 = vmatprep.subr.mxu0 0.0
        %1696 = vmatpush1.msra.mxu0 0.0
        %1697 = vmatprep.subr.mxu0 0.0
        %1698 = vmatpush1.msra.mxu0 0.0
        %1699 = vmatprep.subr.mxu0 0.0
        %1700 = vmatpush1.msra.mxu0 0.0
        %1701 = vmatprep.subr.mxu0 0.0
        %1702 = vmatpush1.msra.mxu0 0.0
        %1703 = vmatprep.subr.mxu0 0.0
        %1704 = vmatpush1.msra.mxu0 0.0
        %1705 = vmatprep.subr.mxu0 0.0
        %1706 = vmatpush1.msra.mxu0 0.0
        %1707 = vmatprep.subr.mxu0 0.0
        %1708 = vmatpush1.msra.mxu0 0.0
        %1709 = vmatprep.subr.mxu0 0.0
        %1710 = vmatpush1.msra.mxu0 0.0
        %1711 = vmatprep.subr.mxu0 0.0
        %1712 = vmatpush1.msra.mxu0 0.0
        %1713 = vmatprep.subr.mxu0 0.0
        %1714 = vmatpush1.msra.mxu0 0.0
        %1715 = vmatprep.subr.mxu0 0.0
        %1716 = vmatpush1.msra.mxu0 0.0
        %1717 = vmatprep.subr.mxu0 0.0
        %1718 = vmatpush1.msra.mxu0 0.0
        %1719 = vmatprep.mubr.f32.mxu0 0.0
        %1720 = vmatmul.mubr.f32.gmra.mrb[0].mxu0 %v1653
        %v1721 = vpop.f32.mrb[0].mxu0
        %v1722 = vadd.f32 0.0, %v1721
        %v1723 = vpop.f32.mrb[0].mxu0
        %1724 = vdwg.mxu0
        %v1726 = vsel %vm824, %v1473, 0
        %1728 = vmatprep.subr.mxu0 0.0
        %1729 = vmatpush1.msra.mxu0 %v815
        %1730 = vmatprep.subr.mxu0 0.0
        %1731 = vmatpush1.msra.mxu0 0.0
        %1732 = vmatprep.subr.mxu0 0.0
        %1733 = vmatpush1.msra.mxu0 0.0
        %1734 = vmatprep.subr.mxu0 0.0
        %1735 = vmatpush1.msra.mxu0 0.0
        %1736 = vmatprep.subr.mxu0 0.0
        %1737 = vmatpush1.msra.mxu0 0.0
        %1738 = vmatprep.subr.mxu0 0.0
        %1739 = vmatpush1.msra.mxu0 0.0
        %1740 = vmatprep.subr.mxu0 0.0
        %1741 = vmatpush1.msra.mxu0 0.0
        %1742 = vmatprep.subr.mxu0 0.0
        %1743 = vmatpush1.msra.mxu0 0.0
        %1744 = vmatprep.subr.mxu0 0.0
        %1745 = vmatpush1.msra.mxu0 0.0
        %1746 = vmatprep.subr.mxu0 0.0
        %1747 = vmatpush1.msra.mxu0 0.0
        %1748 = vmatprep.subr.mxu0 0.0
        %1749 = vmatpush1.msra.mxu0 0.0
        %1750 = vmatprep.subr.mxu0 0.0
        %1751 = vmatpush1.msra.mxu0 0.0
        %1752 = vmatprep.subr.mxu0 0.0
        %1753 = vmatpush1.msra.mxu0 0.0
        %1754 = vmatprep.subr.mxu0 0.0
        %1755 = vmatpush1.msra.mxu0 0.0
        %1756 = vmatprep.subr.mxu0 0.0
        %1757 = vmatpush1.msra.mxu0 0.0
        %1758 = vmatprep.subr.mxu0 0.0
        %1759 = vmatpush1.msra.mxu0 0.0
        %1760 = vmatprep.subr.mxu0 0.0
        %1761 = vmatpush1.msra.mxu0 0.0
        %1762 = vmatprep.subr.mxu0 0.0
        %1763 = vmatpush1.msra.mxu0 0.0
        %1764 = vmatprep.subr.mxu0 0.0
        %1765 = vmatpush1.msra.mxu0 0.0
        %1766 = vmatprep.subr.mxu0 0.0
        %1767 = vmatpush1.msra.mxu0 0.0
        %1768 = vmatprep.subr.mxu0 0.0
        %1769 = vmatpush1.msra.mxu0 0.0
        %1770 = vmatprep.subr.mxu0 0.0
        %1771 = vmatpush1.msra.mxu0 0.0
        %1772 = vmatprep.subr.mxu0 0.0
        %1773 = vmatpush1.msra.mxu0 0.0
        %1774 = vmatprep.subr.mxu0 0.0
        %1775 = vmatpush1.msra.mxu0 0.0
        %1776 = vmatprep.subr.mxu0 0.0
        %1777 = vmatpush1.msra.mxu0 0.0
        %1778 = vmatprep.subr.mxu0 0.0
        %1779 = vmatpush1.msra.mxu0 0.0
        %1780 = vmatprep.subr.mxu0 0.0
        %1781 = vmatpush1.msra.mxu0 0.0
        %1782 = vmatprep.subr.mxu0 0.0
        %1783 = vmatpush1.msra.mxu0 0.0
        %1784 = vmatprep.subr.mxu0 0.0
        %1785 = vmatpush1.msra.mxu0 0.0
        %1786 = vmatprep.subr.mxu0 0.0
        %1787 = vmatpush1.msra.mxu0 0.0
        %1788 = vmatprep.subr.mxu0 0.0
        %1789 = vmatpush1.msra.mxu0 0.0
        %1790 = vmatprep.subr.mxu0 0.0
        %1791 = vmatpush1.msra.mxu0 0.0
        %1792 = vmatprep.mubr.f32.mxu0 0.0
        %1793 = vmatmul.mubr.f32.gmra.mrb[0].mxu0 %v1726
        %v1794 = vpop.f32.mrb[0].mxu0
        %v1795 = vadd.f32 0.0, %v1794
        %v1796 = vpop.f32.mrb[0].mxu0
        %1797 = vdwg.mxu0
        %v1799 = vsel %vm1421, %v1455, 0
        %vm1801 = vcmask 1043456
        %v1803 = vsel %vm1801, %v820, 0
        %1805 = vmatprep.subr.mxu0 0.0
        %1806 = vmatpush1.msra.mxu0 %v1803
        %1807 = vmatprep.subr.mxu0 0.0
        %1808 = vmatpush1.msra.mxu0 0.0
        %1809 = vmatprep.subr.mxu0 0.0
        %1810 = vmatpush1.msra.mxu0 0.0
        %1811 = vmatprep.subr.mxu0 0.0
        %1812 = vmatpush1.msra.mxu0 0.0
        %1813 = vmatprep.subr.mxu0 0.0
        %1814 = vmatpush1.msra.mxu0 0.0
        %1815 = vmatprep.subr.mxu0 0.0
        %1816 = vmatpush1.msra.mxu0 0.0
        %1817 = vmatprep.subr.mxu0 0.0
        %1818 = vmatpush1.msra.mxu0 0.0
        %1819 = vmatprep.subr.mxu0 0.0
        %1820 = vmatpush1.msra.mxu0 0.0
        %1821 = vmatprep.subr.mxu0 0.0
        %1822 = vmatpush1.msra.mxu0 0.0
        %1823 = vmatprep.subr.mxu0 0.0
        %1824 = vmatpush1.msra.mxu0 0.0
        %1825 = vmatprep.subr.mxu0 0.0
        %1826 = vmatpush1.msra.mxu0 0.0
        %1827 = vmatprep.subr.mxu0 0.0
        %1828 = vmatpush1.msra.mxu0 0.0
        %1829 = vmatprep.subr.mxu0 0.0
        %1830 = vmatpush1.msra.mxu0 0.0
        %1831 = vmatprep.subr.mxu0 0.0
        %1832 = vmatpush1.msra.mxu0 0.0
        %1833 = vmatprep.subr.mxu0 0.0
        %1834 = vmatpush1.msra.mxu0 0.0
        %1835 = vmatprep.subr.mxu0 0.0
        %1836 = vmatpush1.msra.mxu0 0.0
        %1837 = vmatprep.subr.mxu0 0.0
        %1838 = vmatpush1.msra.mxu0 0.0
        %1839 = vmatprep.subr.mxu0 0.0
        %1840 = vmatpush1.msra.mxu0 0.0
        %1841 = vmatprep.subr.mxu0 0.0
        %1842 = vmatpush1.msra.mxu0 0.0
        %1843 = vmatprep.subr.mxu0 0.0
        %1844 = vmatpush1.msra.mxu0 0.0
        %1845 = vmatprep.subr.mxu0 0.0
        %1846 = vmatpush1.msra.mxu0 0.0
        %1847 = vmatprep.subr.mxu0 0.0
        %1848 = vmatpush1.msra.mxu0 0.0
        %1849 = vmatprep.subr.mxu0 0.0
        %1850 = vmatpush1.msra.mxu0 0.0
        %1851 = vmatprep.subr.mxu0 0.0
        %1852 = vmatpush1.msra.mxu0 0.0
        %1853 = vmatprep.subr.mxu0 0.0
        %1854 = vmatpush1.msra.mxu0 0.0
        %1855 = vmatprep.subr.mxu0 0.0
        %1856 = vmatpush1.msra.mxu0 0.0
        %1857 = vmatprep.subr.mxu0 0.0
        %1858 = vmatpush1.msra.mxu0 0.0
        %1859 = vmatprep.subr.mxu0 0.0
        %1860 = vmatpush1.msra.mxu0 0.0
        %1861 = vmatprep.subr.mxu0 0.0
        %1862 = vmatpush1.msra.mxu0 0.0
        %1863 = vmatprep.subr.mxu0 0.0
        %1864 = vmatpush1.msra.mxu0 0.0
        %1865 = vmatprep.subr.mxu0 0.0
        %1866 = vmatpush1.msra.mxu0 0.0
        %1867 = vmatprep.subr.mxu0 0.0
        %1868 = vmatpush1.msra.mxu0 0.0
        %1869 = vmatprep.mubr.f32.mxu0 0.0
        %1870 = vmatmul.mubr.f32.gmra.mrb[0].mxu0 %v1799
        %v1871 = vpop.f32.mrb[0].mxu0
        %v1872 = vadd.f32 %v1576, %v1871
        %v1873 = vpop.f32.mrb[0].mxu0
        %1874 = vdwg.mxu0
        %v1876 = vsel %vm1421, %v1457, 0
        %v1879 = vsel %vm1801, %v821, 0
        %1881 = vmatprep.subr.mxu0 0.0
        %1882 = vmatpush1.msra.mxu0 %v1879
        %1883 = vmatprep.subr.mxu0 0.0
        %1884 = vmatpush1.msra.mxu0 0.0
        %1885 = vmatprep.subr.mxu0 0.0
        %1886 = vmatpush1.msra.mxu0 0.0
        %1887 = vmatprep.subr.mxu0 0.0
        %1888 = vmatpush1.msra.mxu0 0.0
        %1889 = vmatprep.subr.mxu0 0.0
        %1890 = vmatpush1.msra.mxu0 0.0
        %1891 = vmatprep.subr.mxu0 0.0
        %1892 = vmatpush1.msra.mxu0 0.0
        %1893 = vmatprep.subr.mxu0 0.0
        %1894 = vmatpush1.msra.mxu0 0.0
        %1895 = vmatprep.subr.mxu0 0.0
        %1896 = vmatpush1.msra.mxu0 0.0
        %1897 = vmatprep.subr.mxu0 0.0
        %1898 = vmatpush1.msra.mxu0 0.0
        %1899 = vmatprep.subr.mxu0 0.0
        %1900 = vmatpush1.msra.mxu0 0.0
        %1901 = vmatprep.subr.mxu0 0.0
        %1902 = vmatpush1.msra.mxu0 0.0
        %1903 = vmatprep.subr.mxu0 0.0
        %1904 = vmatpush1.msra.mxu0 0.0
        %1905 = vmatprep.subr.mxu0 0.0
        %1906 = vmatpush1.msra.mxu0 0.0
        %1907 = vmatprep.subr.mxu0 0.0
        %1908 = vmatpush1.msra.mxu0 0.0
        %1909 = vmatprep.subr.mxu0 0.0
        %1910 = vmatpush1.msra.mxu0 0.0
        %1911 = vmatprep.subr.mxu0 0.0
        %1912 = vmatpush1.msra.mxu0 0.0
        %1913 = vmatprep.subr.mxu0 0.0
        %1914 = vmatpush1.msra.mxu0 0.0
        %1915 = vmatprep.subr.mxu0 0.0
        %1916 = vmatpush1.msra.mxu0 0.0
        %1917 = vmatprep.subr.mxu0 0.0
        %1918 = vmatpush1.msra.mxu0 0.0
        %1919 = vmatprep.subr.mxu0 0.0
        %1920 = vmatpush1.msra.mxu0 0.0
        %1921 = vmatprep.subr.mxu0 0.0
        %1922 = vmatpush1.msra.mxu0 0.0
        %1923 = vmatprep.subr.mxu0 0.0
        %1924 = vmatpush1.msra.mxu0 0.0
        %1925 = vmatprep.subr.mxu0 0.0
        %1926 = vmatpush1.msra.mxu0 0.0
        %1927 = vmatprep.subr.mxu0 0.0
        %1928 = vmatpush1.msra.mxu0 0.0
        %1929 = vmatprep.subr.mxu0 0.0
        %1930 = vmatpush1.msra.mxu0 0.0
        %1931 = vmatprep.subr.mxu0 0.0
        %1932 = vmatpush1.msra.mxu0 0.0
        %1933 = vmatprep.subr.mxu0 0.0
        %1934 = vmatpush1.msra.mxu0 0.0
        %1935 = vmatprep.subr.mxu0 0.0
        %1936 = vmatpush1.msra.mxu0 0.0
        %1937 = vmatprep.subr.mxu0 0.0
        %1938 = vmatpush1.msra.mxu0 0.0
        %1939 = vmatprep.subr.mxu0 0.0
        %1940 = vmatpush1.msra.mxu0 0.0
        %1941 = vmatprep.subr.mxu0 0.0
        %1942 = vmatpush1.msra.mxu0 0.0
        %1943 = vmatprep.subr.mxu0 0.0
        %1944 = vmatpush1.msra.mxu0 0.0
        %1945 = vmatprep.mubr.f32.mxu0 0.0
        %1946 = vmatmul.mubr.f32.gmra.mrb[0].mxu0 %v1876
        %v1947 = vpop.f32.mrb[0].mxu0
        %v1948 = vadd.f32 %v1649, %v1947
        %v1949 = vpop.f32.mrb[0].mxu0
        %1950 = vdwg.mxu0
        %v1952 = vsel %vm1421, %v1459, 0
        %v1955 = vsel %vm1801, %v822, 0
        %1957 = vmatprep.subr.mxu0 0.0
        %1958 = vmatpush1.msra.mxu0 %v1955
        %1959 = vmatprep.subr.mxu0 0.0
        %1960 = vmatpush1.msra.mxu0 0.0
        %1961 = vmatprep.subr.mxu0 0.0
        %1962 = vmatpush1.msra.mxu0 0.0
        %1963 = vmatprep.subr.mxu0 0.0
        %1964 = vmatpush1.msra.mxu0 0.0
        %1965 = vmatprep.subr.mxu0 0.0
        %1966 = vmatpush1.msra.mxu0 0.0
        %1967 = vmatprep.subr.mxu0 0.0
        %1968 = vmatpush1.msra.mxu0 0.0
        %1969 = vmatprep.subr.mxu0 0.0
        %1970 = vmatpush1.msra.mxu0 0.0
        %1971 = vmatprep.subr.mxu0 0.0
        %1972 = vmatpush1.msra.mxu0 0.0
        %1973 = vmatprep.subr.mxu0 0.0
        %1974 = vmatpush1.msra.mxu0 0.0
        %1975 = vmatprep.subr.mxu0 0.0
        %1976 = vmatpush1.msra.mxu0 0.0
        %1977 = vmatprep.subr.mxu0 0.0
        %1978 = vmatpush1.msra.mxu0 0.0
        %1979 = vmatprep.subr.mxu0 0.0
        %1980 = vmatpush1.msra.mxu0 0.0
        %1981 = vmatprep.subr.mxu0 0.0
        %1982 = vmatpush1.msra.mxu0 0.0
        %1983 = vmatprep.subr.mxu0 0.0
        %1984 = vmatpush1.msra.mxu0 0.0
        %1985 = vmatprep.subr.mxu0 0.0
        %1986 = vmatpush1.msra.mxu0 0.0
        %1987 = vmatprep.subr.mxu0 0.0
        %1988 = vmatpush1.msra.mxu0 0.0
        %1989 = vmatprep.subr.mxu0 0.0
        %1990 = vmatpush1.msra.mxu0 0.0
        %1991 = vmatprep.subr.mxu0 0.0
        %1992 = vmatpush1.msra.mxu0 0.0
        %1993 = vmatprep.subr.mxu0 0.0
        %1994 = vmatpush1.msra.mxu0 0.0
        %1995 = vmatprep.subr.mxu0 0.0
        %1996 = vmatpush1.msra.mxu0 0.0
        %1997 = vmatprep.subr.mxu0 0.0
        %1998 = vmatpush1.msra.mxu0 0.0
        %1999 = vmatprep.subr.mxu0 0.0
        %2000 = vmatpush1.msra.mxu0 0.0
        %2001 = vmatprep.subr.mxu0 0.0
        %2002 = vmatpush1.msra.mxu0 0.0
        %2003 = vmatprep.subr.mxu0 0.0
        %2004 = vmatpush1.msra.mxu0 0.0
        %2005 = vmatprep.subr.mxu0 0.0
        %2006 = vmatpush1.msra.mxu0 0.0
        %2007 = vmatprep.subr.mxu0 0.0
        %2008 = vmatpush1.msra.mxu0 0.0
        %2009 = vmatprep.subr.mxu0 0.0
        %2010 = vmatpush1.msra.mxu0 0.0
        %2011 = vmatprep.subr.mxu0 0.0
        %2012 = vmatpush1.msra.mxu0 0.0
        %2013 = vmatprep.subr.mxu0 0.0
        %2014 = vmatpush1.msra.mxu0 0.0
        %2015 = vmatprep.subr.mxu0 0.0
        %2016 = vmatpush1.msra.mxu0 0.0
        %2017 = vmatprep.subr.mxu0 0.0
        %2018 = vmatpush1.msra.mxu0 0.0
        %2019 = vmatprep.subr.mxu0 0.0
        %2020 = vmatpush1.msra.mxu0 0.0
        %2021 = vmatprep.mubr.f32.mxu0 0.0
        %2022 = vmatmul.mubr.f32.gmra.mrb[0].mxu0 %v1952
        %v2023 = vpop.f32.mrb[0].mxu0
        %v2024 = vadd.f32 %v1722, %v2023
        %v2025 = vpop.f32.mrb[0].mxu0
        %2026 = vdwg.mxu0
        %v2028 = vsel %vm1421, %v1461, 0
        %v2031 = vsel %vm1801, %v823, 0
        %2033 = vmatprep.subr.mxu0 0.0
        %2034 = vmatpush1.msra.mxu0 %v2031
        %2035 = vmatprep.subr.mxu0 0.0
        %2036 = vmatpush1.msra.mxu0 0.0
        %2037 = vmatprep.subr.mxu0 0.0
        %2038 = vmatpush1.msra.mxu0 0.0
        %2039 = vmatprep.subr.mxu0 0.0
        %2040 = vmatpush1.msra.mxu0 0.0
        %2041 = vmatprep.subr.mxu0 0.0
        %2042 = vmatpush1.msra.mxu0 0.0
        %2043 = vmatprep.subr.mxu0 0.0
        %2044 = vmatpush1.msra.mxu0 0.0
        %2045 = vmatprep.subr.mxu0 0.0
        %2046 = vmatpush1.msra.mxu0 0.0
        %2047 = vmatprep.subr.mxu0 0.0
        %2048 = vmatpush1.msra.mxu0 0.0
        %2049 = vmatprep.subr.mxu0 0.0
        %2050 = vmatpush1.msra.mxu0 0.0
        %2051 = vmatprep.subr.mxu0 0.0
        %2052 = vmatpush1.msra.mxu0 0.0
        %2053 = vmatprep.subr.mxu0 0.0
        %2054 = vmatpush1.msra.mxu0 0.0
        %2055 = vmatprep.subr.mxu0 0.0
        %2056 = vmatpush1.msra.mxu0 0.0
        %2057 = vmatprep.subr.mxu0 0.0
        %2058 = vmatpush1.msra.mxu0 0.0
        %2059 = vmatprep.subr.mxu0 0.0
        %2060 = vmatpush1.msra.mxu0 0.0
        %2061 = vmatprep.subr.mxu0 0.0
        %2062 = vmatpush1.msra.mxu0 0.0
        %2063 = vmatprep.subr.mxu0 0.0
        %2064 = vmatpush1.msra.mxu0 0.0
        %2065 = vmatprep.subr.mxu0 0.0
        %2066 = vmatpush1.msra.mxu0 0.0
        %2067 = vmatprep.subr.mxu0 0.0
        %2068 = vmatpush1.msra.mxu0 0.0
        %2069 = vmatprep.subr.mxu0 0.0
        %2070 = vmatpush1.msra.mxu0 0.0
        %2071 = vmatprep.subr.mxu0 0.0
        %2072 = vmatpush1.msra.mxu0 0.0
        %2073 = vmatprep.subr.mxu0 0.0
        %2074 = vmatpush1.msra.mxu0 0.0
        %2075 = vmatprep.subr.mxu0 0.0
        %2076 = vmatpush1.msra.mxu0 0.0
        %2077 = vmatprep.subr.mxu0 0.0
        %2078 = vmatpush1.msra.mxu0 0.0
        %2079 = vmatprep.subr.mxu0 0.0
        %2080 = vmatpush1.msra.mxu0 0.0
        %2081 = vmatprep.subr.mxu0 0.0
        %2082 = vmatpush1.msra.mxu0 0.0
        %2083 = vmatprep.subr.mxu0 0.0
        %2084 = vmatpush1.msra.mxu0 0.0
        %2085 = vmatprep.subr.mxu0 0.0
        %2086 = vmatpush1.msra.mxu0 0.0
        %2087 = vmatprep.subr.mxu0 0.0
        %2088 = vmatpush1.msra.mxu0 0.0
        %2089 = vmatprep.subr.mxu0 0.0
        %2090 = vmatpush1.msra.mxu0 0.0
        %2091 = vmatprep.subr.mxu0 0.0
        %2092 = vmatpush1.msra.mxu0 0.0
        %2093 = vmatprep.subr.mxu0 0.0
        %2094 = vmatpush1.msra.mxu0 0.0
        %2095 = vmatprep.subr.mxu0 0.0
        %2096 = vmatpush1.msra.mxu0 0.0
        %2097 = vmatprep.mubr.f32.mxu0 0.0
        %2098 = vmatmul.mubr.f32.gmra.mrb[0].mxu0 %v2028
        %v2099 = vpop.f32.mrb[0].mxu0
        %v2100 = vadd.f32 %v1795, %v2099
        %v2101 = vpop.f32.mrb[0].mxu0
        %2102 = vdwg.mxu0
        %v2103 = vmul.f32 %v1872, %v1502
        %v2104 = vmul.f32 %v1948, %v1503
        %v2105 = vmul.f32 %v2024, %v1504
        %v2106 = vmul.f32 %v2100, %v1505
        %v2107 = vcombine.low %v2103, %v2105
        %v2108 = vcombine.high %v2103, %v2105
        %v2110 = vunpack.c.l.s4 1983009808
        %v2111 = vunpack.c.0.s8 %v2110
        %v2112 = vlaneseq
        %v2113 = vshrl.u32 %v2112, 7
        %v2114 = vsub.s32 %v2111, %v2113
        %v2115 = vrot.slane %v2107, %v2114
        %v2117 = vunpack.c.l.s4 1983009808
        %v2118 = vunpack.c.0.s8 %v2117
        %v2119 = vlaneseq
        %v2120 = vshrl.u32 %v2119, 7
        %v2121 = vsub.s32 %v2118, %v2120
        %v2122 = vrot.slane %v2108, %v2121
        %v2123 = vcombine.low %v2104, %v2106
        %v2124 = vcombine.high %v2104, %v2106
        %v2126 = vunpack.c.l.s4 1983009808
        %v2127 = vunpack.c.0.s8 %v2126
        %v2128 = vlaneseq
        %v2129 = vshrl.u32 %v2128, 7
        %v2130 = vsub.s32 %v2127, %v2129
        %v2131 = vrot.slane %v2123, %v2130
        %v2133 = vunpack.c.l.s4 1983009808
        %v2134 = vunpack.c.0.s8 %v2133
        %v2135 = vlaneseq
        %v2136 = vshrl.u32 %v2135, 7
        %v2137 = vsub.s32 %v2134, %v2136
        %v2138 = vrot.slane %v2124, %v2137
        %v2139 = vcombine.low %v2115, %v2131
        %v2140 = vcombine.high %v2115, %v2131
        %v2142 = vunpack.c.l.s4 1934713408
        %v2143 = vunpack.c.0.s8 %v2142
        %v2144 = vlaneseq
        %v2145 = vshrl.u32 %v2144, 7
        %v2146 = vsub.s32 %v2143, %v2145
        %v2147 = vrot.slane %v2139, %v2146
        %v2149 = vunpack.c.l.s4 1934713408
        %v2150 = vunpack.c.0.s8 %v2149
        %v2151 = vlaneseq
        %v2152 = vshrl.u32 %v2151, 7
        %v2153 = vsub.s32 %v2150, %v2152
        %v2154 = vrot.slane %v2140, %v2153
        %v2155 = vcombine.low %v2122, %v2138
        %v2156 = vcombine.high %v2122, %v2138
        %v2158 = vunpack.c.l.s4 1934713408
        %v2159 = vunpack.c.0.s8 %v2158
        %v2160 = vlaneseq
        %v2161 = vshrl.u32 %v2160, 7
        %v2162 = vsub.s32 %v2159, %v2161
        %v2163 = vrot.slane %v2155, %v2162
        %v2165 = vunpack.c.l.s4 1934713408
        %v2166 = vunpack.c.0.s8 %v2165
        %v2167 = vlaneseq
        %v2168 = vshrl.u32 %v2167, 7
        %v2169 = vsub.s32 %v2166, %v2168
        %v2170 = vrot.slane %v2156, %v2169
        %v2171 = vcombine.high %v2147, 0.0
        %v2172 = vcombine.high %v2154, 0.0
        %v2173 = vcombine.high %v2163, 0.0
        %v2174 = vcombine.high %v2170, 0.0
        %v2175 = vcombine.low %v2147, %v2154
        %v2177 = vunpack.c.l.s4 1983009808
        %v2178 = vunpack.c.0.s8 %v2177
        %v2179 = vlaneseq
        %v2180 = vshrl.u32 %v2179, 7
        %v2181 = vsub.s32 %v2178, %v2180
        %v2182 = vrot.slane %v2175, %v2181
        %v2183 = vcombine.low %v2171, %v2172
        %v2185 = vunpack.c.l.s4 1983009808
        %v2186 = vunpack.c.0.s8 %v2185
        %v2187 = vlaneseq
        %v2188 = vshrl.u32 %v2187, 7
        %v2189 = vsub.s32 %v2186, %v2188
        %v2190 = vrot.slane %v2183, %v2189
        %v2191 = vcombine.low %v2163, %v2170
        %v2193 = vunpack.c.l.s4 1983009808
        %v2194 = vunpack.c.0.s8 %v2193
        %v2195 = vlaneseq
        %v2196 = vshrl.u32 %v2195, 7
        %v2197 = vsub.s32 %v2194, %v2196
        %v2198 = vrot.slane %v2191, %v2197
        %v2199 = vcombine.low %v2173, %v2174
        %v2201 = vunpack.c.l.s4 1983009808
        %v2202 = vunpack.c.0.s8 %v2201
        %v2203 = vlaneseq
        %v2204 = vshrl.u32 %v2203, 7
        %v2205 = vsub.s32 %v2202, %v2204
        %v2206 = vrot.slane %v2199, %v2205
        %v2207 = vcombine.low %v2182, %v2190
        %v2208 = vcombine.high %v2182, %v2190
        %v2210 = vunpack.c.l.s4 1934713408
        %v2211 = vunpack.c.0.s8 %v2210
        %v2212 = vlaneseq
        %v2213 = vshrl.u32 %v2212, 7
        %v2214 = vsub.s32 %v2211, %v2213
        %v2215 = vrot.slane %v2207, %v2214
        %v2217 = vunpack.c.l.s4 1934713408
        %v2218 = vunpack.c.0.s8 %v2217
        %v2219 = vlaneseq
        %v2220 = vshrl.u32 %v2219, 7
        %v2221 = vsub.s32 %v2218, %v2220
        %v2222 = vrot.slane %v2208, %v2221
        %v2223 = vcombine.low %v2198, %v2206
        %v2224 = vcombine.high %v2198, %v2206
        %v2226 = vunpack.c.l.s4 1934713408
        %v2227 = vunpack.c.0.s8 %v2226
        %v2228 = vlaneseq
        %v2229 = vshrl.u32 %v2228, 7
        %v2230 = vsub.s32 %v2227, %v2229
        %v2231 = vrot.slane %v2223, %v2230
        %v2233 = vunpack.c.l.s4 1934713408
        %v2234 = vunpack.c.0.s8 %v2233
        %v2235 = vlaneseq
        %v2236 = vshrl.u32 %v2235, 7
        %v2237 = vsub.s32 %v2234, %v2236
        %v2238 = vrot.slane %v2224, %v2237
        %v2239 = vcombine.low %v2215, %v2231
        %v2240 = vcombine.high %v2215, %v2231
        %v2241 = vcombine.low %v2222, %v2238
        %v2242 = vcombine.high %v2222, %v2238
        %2244 = vrot.lane.b32.xlu0 %v2240, 8
        %v2245 = vpop.permute.xlu0 %2244
        %2248 = vrot.lane.b32.xlu0 %v2241, 16
        %v2249 = vpop.permute.xlu0 %2248
        %2252 = vrot.lane.b32.xlu0 %v2242, 24
        %v2253 = vpop.permute.xlu0 %2252
        %v2255 = vsel %vm824, %v2239, %v2245
        %vm2256 = vcmask 130048
        %v2257 = vsel %vm2256, %v2255, %v2249
        %vm2258 = vcmask 195584
        %v2259 = vsel %vm2258, %v2257, %v2253
        %v2260 = vld [vmem:[%s4] sm:$0xff]
        %v2261 = vld [vmem:[%s4 + $0x8] sm:$0xff]
        %v2262 = vld [vmem:[%s4 + $0x10] sm:$0xff]
        %v2263 = vld [vmem:[%s4 + $0x18] sm:$0xff]
        %v2264 = vld [vmem:[%s5] sm:$0x1]
        %v2266 = vlaneseq
        %v2267 = vshrl.u32 %v2266, 7
        %v2268 = vsub.s32 0, %v2267
        %v2269 = vrot.slane %v2264, %v2268
        %v2272 = vsel %vm292, %v2259, 0
        %2274 = vmatprep.subr.mxu0 0.0
        %2275 = vmatpush1.msra.mxu0 %v2260
        %2276 = vmatprep.subr.mxu0 0.0
        %2277 = vmatpush1.msra.mxu0 %v2261
        %2278 = vmatprep.subr.mxu0 0.0
        %2279 = vmatpush1.msra.mxu0 %v2262
        %2280 = vmatprep.subr.mxu0 0.0
        %2281 = vmatpush1.msra.mxu0 %v2263
        %2282 = vmatprep.subr.mxu0 0.0
        %2283 = vmatpush1.msra.mxu0 0.0
        %2284 = vmatprep.subr.mxu0 0.0
        %2285 = vmatpush1.msra.mxu0 0.0
        %2286 = vmatprep.subr.mxu0 0.0
        %2287 = vmatpush1.msra.mxu0 0.0
        %2288 = vmatprep.subr.mxu0 0.0
        %2289 = vmatpush1.msra.mxu0 0.0
        %2290 = vmatprep.subr.mxu0 0.0
        %2291 = vmatpush1.msra.mxu0 0.0
        %2292 = vmatprep.subr.mxu0 0.0
        %2293 = vmatpush1.msra.mxu0 0.0
        %2294 = vmatprep.subr.mxu0 0.0
        %2295 = vmatpush1.msra.mxu0 0.0
        %2296 = vmatprep.subr.mxu0 0.0
        %2297 = vmatpush1.msra.mxu0 0.0
        %2298 = vmatprep.subr.mxu0 0.0
        %2299 = vmatpush1.msra.mxu0 0.0
        %2300 = vmatprep.subr.mxu0 0.0
        %2301 = vmatpush1.msra.mxu0 0.0
        %2302 = vmatprep.subr.mxu0 0.0
        %2303 = vmatpush1.msra.mxu0 0.0
        %2304 = vmatprep.subr.mxu0 0.0
        %2305 = vmatpush1.msra.mxu0 0.0
        %2306 = vmatprep.subr.mxu0 0.0
        %2307 = vmatpush1.msra.mxu0 0.0
        %2308 = vmatprep.subr.mxu0 0.0
        %2309 = vmatpush1.msra.mxu0 0.0
        %2310 = vmatprep.subr.mxu0 0.0
        %2311 = vmatpush1.msra.mxu0 0.0
        %2312 = vmatprep.subr.mxu0 0.0
        %2313 = vmatpush1.msra.mxu0 0.0
        %2314 = vmatprep.subr.mxu0 0.0
        %2315 = vmatpush1.msra.mxu0 0.0
        %2316 = vmatprep.subr.mxu0 0.0
        %2317 = vmatpush1.msra.mxu0 0.0
        %2318 = vmatprep.subr.mxu0 0.0
        %2319 = vmatpush1.msra.mxu0 0.0
        %2320 = vmatprep.subr.mxu0 0.0
        %2321 = vmatpush1.msra.mxu0 0.0
        %2322 = vmatprep.subr.mxu0 0.0
        %2323 = vmatpush1.msra.mxu0 0.0
        %2324 = vmatprep.subr.mxu0 0.0
        %2325 = vmatpush1.msra.mxu0 0.0
        %2326 = vmatprep.subr.mxu0 0.0
        %2327 = vmatpush1.msra.mxu0 0.0
        %2328 = vmatprep.subr.mxu0 0.0
        %2329 = vmatpush1.msra.mxu0 0.0
        %2330 = vmatprep.subr.mxu0 0.0
        %2331 = vmatpush1.msra.mxu0 0.0
        %2332 = vmatprep.subr.mxu0 0.0
        %2333 = vmatpush1.msra.mxu0 0.0
        %2334 = vmatprep.subr.mxu0 0.0
        %2335 = vmatpush1.msra.mxu0 0.0
        %2336 = vmatprep.subr.mxu0 0.0
        %2337 = vmatpush1.msra.mxu0 0.0
        %2338 = vmatprep.mubr.f32.mxu0 0.0
        %2339 = vmatmul.mubr.f32.gmra.mrb[0].mxu0 %v2272
        %v2340 = vpop.f32.mrb[0].mxu0
        %v2341 = vadd.f32 %v2269, %v2340
        %v2342 = vpop.f32.mrb[0].mxu0
        %2343 = vdwg.mxu0
        %2344 = vst.msk [vmem:[%s272] sm:$0xff] %vm292, %v2341
        %s2345 = sand.u32 %s169, 1
        %s2346 = scalar_lea.sflag [#allocation3], %s2345
        %s2347 = sand.u32 %s169, 1
        %s2348 = smul.addr %s2347, 8
        %s2349 = scalar_lea.vmem [#allocation2], %s2348
        // Predicated region
        $region45: #{pret_attention.1} parent=43 // pred_check
          %p2350 = pneg %p179
        $region46: #{pret_attention.1} parent=43 // pred_check_branch
          %2352 = sbr.rel (%p2350) target = $region48
        $region47: #{pret_attention.1} parent=43 // pred_region
          %s2354 = ssub.s32 128, 128
          %2355 = vsyncadd %s2346, %s2354
          %s2356 = smul.addr %s20, 128
          %s2357 = scalar_lea.hbm %s6, %s2356
          %s2359 = sshll.u32 %s2349, 4
          %s2360 = int_to_ptr.vmem [resolvable:$true] %s2359
          %2362 = dma.vmem_to_hbm [thread:$0]  %s2360, 128, %s2357, %s2346
        $region48: #{pret_attention.1} parent=43 // pred_fallthru
          _
      $region44: #{pret_attention.1} parent=5 // pred_fallthru
        _
      %p2363 = scmp.le.s32.totalorder 2, %s15
      // Predicated region
      $region49: #{pret_attention.1} parent=5 // pred_check
        %p2364 = pneg %p2363
      $region50: #{pret_attention.1} parent=5 // pred_check_branch
        %2366 = sbr.rel (%p2364) target = $region52
      $region51: #{pret_attention.1} parent=5 // pred_region
        %s2367 = ssub.s32 %s15, 2
        // Predicated region
        $region53: #{pret_attention.1} parent=51 // pred_check
          %p2368 = pneg %p185
        $region54: #{pret_attention.1} parent=51 // pred_check_branch
          %2370 = sbr.rel (%p2368) target = $region56
        $region55: #{pret_attention.1} parent=51 // pred_region
          %s2371 = sand.u32 %s170, 1
          %s2372 = scalar_lea.sflag [#allocation3], %s2371
          %s2373 = sand.u32 %s170, 1
          %s2374 = smul.addr %s2373, 8
          %s2375 = scalar_lea.vmem [#allocation2], %s2374
          %2376 = dma.done %s2372, 128
        $region56: #{pret_attention.1} parent=51 // pred_fallthru
          _
      $region52: #{pret_attention.1} parent=5 // pred_fallthru
        _
    $region6: #{pret_attention.1} parent=1 // loop_footer
      %s19 = sadd.s32 1, %s15
    $region7: #{pret_attention.1} parent=1 // loop_footer_branch
      %14 = sbr.rel target = $region3
    $region8: #{pret_attention.1} parent=1 // loop_exit
      _
    %2377 = vsyncpa [#allocation3], 1
    %s2378 = scalar_lea.sflag [#allocation3], 1
    %2379 = vsyncpa %s2378, 1

</llo_original>
